<compile_context>
chip_gen: v7x
topology: tpu7x:2x2x1
jax: 0.10.0
libtpu: 0.0.40
codegen_flags: <defaults>
</compile_context>

<pallas_src>
import functools

import jax
import jax.numpy as jnp
from jax.experimental import pallas as pl
from jax.experimental.pallas import tpu as pltpu


# ----------------------------------------------------------------------------- kernels
def _conv_stats_kernel(lhs_ref, w_ref, b_ref, y_ref, ps_ref):
    """Single fused K=9*Cin matmul + bias + per-band BN partial statistics.

    lhs_ref: (1, band, 9*Cin)   bf16  tap-packed conv patches for this (image, band)
    w_ref  : (9*Cin, Coutp)     bf16  conv weights, tap-major rows, zero in padded lanes
    b_ref  : (1, Coutp)         f32   conv bias (zero in padded lanes)
    y_ref  : (1, band, Cout)    bf16  pre-BN conv output, real channels only
    ps_ref : (1, 1, 2, Coutp)   f32   partial stats: row0 = sum(y), row1 = sum(y*y)
    """
    cout = y_ref.shape[-1]
    acc = jnp.dot(lhs_ref[0], w_ref[...], preferred_element_type=jnp.float32)
    acc = acc + b_ref[...]
    ps_ref[0, 0, 0:1, :] = jnp.sum(acc, axis=0, keepdims=True)
    ps_ref[0, 0, 1:2, :] = jnp.sum(acc * acc, axis=0, keepdims=True)
    y_ref[0] = acc[:, :cout].astype(y_ref.dtype)


def _bn_lrelu_kernel(y_ref, scale_ref, shift_ref, o_ref, *, slope):
    """Fused BatchNorm (precomputed per-channel scale/shift) + LeakyReLU."""
    z = y_ref[0].astype(jnp.float32) * scale_ref[...] + shift_ref[...]
    o_ref[0] = jnp.where(z >= 0, z, slope * z).astype(o_ref.dtype)


# ----------------------------------------------------------------------------- glue
def _upsample2x_h(x):
    n, h, w, c = x.shape
    prev = jnp.concatenate([x[:, :1], x[:, :-1]], axis=1)
    nxt = jnp.concatenate([x[:, 1:], x[:, -1:]], axis=1)
    even = 0.25 * prev + 0.75 * x
    odd = 0.75 * x + 0.25 * nxt
    return jnp.stack([even, odd], axis=2).reshape(n, 2 * h, w, c)


def _upsample2x_w(x):
    n, h, w, c = x.shape
    prev = jnp.concatenate([x[:, :, :1], x[:, :, :-1]], axis=2)
    nxt = jnp.concatenate([x[:, :, 1:], x[:, :, -1:]], axis=2)
    even = 0.25 * prev + 0.75 * x
    odd = 0.75 * x + 0.25 * nxt
    return jnp.stack([even, odd], axis=3).reshape(n, h, 2 * w, c)


def _bilinear_upsample_x2(x_nhwc):
    """F.interpolate(scale_factor=2, mode='bilinear', align_corners=False) as
    fixed-weight adds of edge-clamped shifted slices (no gathers)."""
    return _upsample2x_w(_upsample2x_h(x_nhwc))


def _pick_band_rows(rows, cap=2048):
    """Largest multiple-of-16 divisor of `rows` <= min(cap, rows//2) so the band grid
    axis has >= 2 steps (megacore / pipelining).  Falls back to the full extent."""
    limit = min(cap, rows // 2) if rows >= 32 else min(cap, rows)
    cand = (limit // 16) * 16
    while cand >= 16:
        if rows % cand == 0:
            return cand
        cand -= 16
    return rows


def upsample_forward(x_nchw, w_oihw, conv_bias, gamma, beta, *, eps=1e-5, slope=0.01):
    N, Cin, H, W = x_nchw.shape
    Cout = w_oihw.shape[0]
    Ho, Wo = 2 * H, 2 * W
    rows = Ho * Wo                                 # output pixels per image
    M = N * rows
    Coutp = 128                                    # lane-dense MXU columns / BN stats
    K = 9 * Cin                                    # fused contraction depth
    assert Cout <= Coutp

    # ---- XLA preamble: bilinear x2 (shifted adds), reflect pad, tap-packed im2col ----
    x = jnp.transpose(x_nchw, (0, 2, 3, 1)).astype(jnp.float32)           # NCHW -> NHWC
    xu = _bilinear_upsample_x2(x).astype(jnp.bfloat16)                    # (N, Ho, Wo, Cin)
    xp = jnp.pad(xu, ((0, 0), (1, 1), (1, 1), (0, 0)), mode="reflect")    # (N, Ho+2, Wo+2, Cin)
    taps = [xp[:, ky:ky + Ho, kx:kx + Wo, :] for ky in range(3) for kx in range(3)]
    lhs = jnp.concatenate(taps, axis=-1).reshape(N, rows, K)              # bf16 tap-packed LHS

    # conv weight: (Cout, Cin, 3, 3) -> (ky, kx, Cin, Cout) -> (9*Cin, Coutp), bf16
    w_t = jnp.transpose(w_oihw.astype(jnp.float32), (2, 3, 1, 0)).reshape(K, Cout)
    w_p = jnp.pad(w_t, ((0, 0), (0, Coutp - Cout))).astype(jnp.bfloat16)
    b_p = jnp.pad(conv_bias.astype(jnp.float32), (0, Coutp - Cout)).reshape(1, Coutp)

    band = _pick_band_rows(rows)
    nb = rows // band
    cparams = pltpu.CompilerParams(
        dimension_semantics=("parallel", "parallel"),
        vmem_limit_bytes=32 * 1024 * 1024,
    )

    # ---- pass 1: fused conv (one K=9*Cin matmul per band) + bias + BN partials ----
    y, ps = pl.pallas_call(
        _conv_stats_kernel,
        out_shape=(jax.ShapeDtypeStruct((N, rows, Cout), jnp.bfloat16),
                   jax.ShapeDtypeStruct((N, nb, 2, Coutp), jnp.float32)),
        grid=(N, nb),
        in_specs=[pl.BlockSpec((1, band, K), lambda n, b: (n, b, 0)),
                  pl.BlockSpec((K, Coutp), lambda n, b: (0, 0)),
                  pl.BlockSpec((1, Coutp), lambda n, b: (0, 0))],
        out_specs=(pl.BlockSpec((1, band, Cout), lambda n, b: (n, b, 0)),
                   pl.BlockSpec((1, 1, 2, Coutp), lambda n, b: (n, b, 0, 0))),
        compiler_params=cparams,
        cost_estimate=pl.CostEstimate(
            flops=2 * M * K * Coutp,
            transcendentals=0,
            bytes_accessed=M * K * 2 + K * Coutp * 2 + M * Cout * 2 + N * nb * 2 * Coutp * 4),
    )(lhs, w_p, b_p)

    # BatchNorm2d in training mode: biased batch statistics over (N, H, W), reduced in
    # XLA from the per-band partials.  Clamp guards E[y^2]-E[y]^2 cancellation; for very
    # large M switch to centered per-band partials if tolerances tighten.
    s = jnp.sum(ps, axis=(0, 1))                                           # (2, Coutp)
    count = jnp.float32(M)
    mean = s[0, :Cout] / count
    var = jnp.maximum(s[1, :Cout] / count - mean * mean, 0.0)
    scale = gamma.astype(jnp.float32) * jax.lax.rsqrt(var + eps)
    shift = beta.astype(jnp.float32) - mean * scale

    # ---- pass 2: BN + LeakyReLU over the real Cout channels only ----
    out_flat = pl.pallas_call(
        functools.partial(_bn_lrelu_kernel, slope=slope),
        out_shape=jax.ShapeDtypeStruct((N, rows, Cout), jnp.float32),
        grid=(N, nb),
        in_specs=[pl.BlockSpec((1, band, Cout), lambda n, b: (n, b, 0)),
                  pl.BlockSpec((1, Cout), lambda n, b: (0, 0)),
                  pl.BlockSpec((1, Cout), lambda n, b: (0, 0))],
        out_specs=pl.BlockSpec((1, band, Cout), lambda n, b: (n, b, 0)),
        compiler_params=cparams,
        cost_estimate=pl.CostEstimate(
            flops=4 * M * Cout,
            transcendentals=0,
            bytes_accessed=M * Cout * 2 + M * Cout * 4),
    )(y, scale.reshape(1, Cout), shift.reshape(1, Cout))

    out = out_flat.reshape(N, Ho, Wo, Cout)
    return jnp.transpose(out, (0, 3, 1, 2))                               # NHWC -> NCHW


# ----------------------------------------------------------------------------- main
if __name__ == "__main__":
    key = jax.random.PRNGKey(0)
    k_x, k_w, k_b, k_g, k_bt = jax.random.split(key, 5)

    N, Cin, Cout, H, W = 2, 4, 8, 16, 16

    x = jax.random.normal(k_x, (N, Cin, H, W), jnp.float32)
    w = jax.random.normal(k_w, (Cout, Cin, 3, 3), jnp.float32) / jnp.sqrt(9.0 * Cin)
    b = 0.1 * jax.random.normal(k_b, (Cout,), jnp.float32)
    gamma = 1.0 + 0.1 * jax.random.normal(k_g, (Cout,), jnp.float32)
    beta = 0.1 * jax.random.normal(k_bt, (Cout,), jnp.float32)

    out = jax.jit(upsample_forward)(x, w, b, gamma, beta)
    jax.block_until_ready(out)
    assert out.shape == (N, Cout, 2 * H, 2 * W), out.shape
    print("KERNEL_OK")
</pallas_src>

<mosaic_0001>
module attributes {stable_mosaic.version = 11 : i64} {
  func.func @_conv_stats_kernel(%arg0: i32, %arg1: i32, %arg2: memref<1x512x36xbf16, #tpu.memory_space<vmem>>, %arg3: memref<36x128xbf16, #tpu.memory_space<vmem>>, %arg4: memref<1x128xf32, #tpu.memory_space<vmem>>, %arg5: memref<1x512x8xbf16, #tpu.memory_space<vmem>>, %arg6: memref<1x1x2x128xf32, #tpu.memory_space<vmem>>) attributes {dimension_semantics = [#tpu.dimension_semantics<parallel>, #tpu.dimension_semantics<parallel>], iteration_bounds = array<i64: 2, 2>, scalar_prefetch = 0 : i64, scratch_operands = 0 : i64, tpu.core_type = #tpu.core_type<tc>, window_params = [{transform_indices = @transform_0, window_bounds = array<i64: 1, 512, 36>}, {pipeline_mode = #tpu.pipeline_mode<synchronous>, transform_indices = @transform_1, window_bounds = array<i64: 36, 128>}, {pipeline_mode = #tpu.pipeline_mode<synchronous>, transform_indices = @transform_2, window_bounds = array<i64: 1, 128>}, {transform_indices = @transform_3, window_bounds = array<i64: 1, 512, 8>}, {transform_indices = @transform_4, window_bounds = array<i64: 1, 1, 2, 128>}]} {
    %c0 = arith.constant 0 : index
    %c0_0 = arith.constant 0 : index
    %c0_1 = arith.constant 0 : index
    %0 = vector.load %arg2[%c0, %c0_0, %c0_1] : memref<1x512x36xbf16, #tpu.memory_space<vmem>>, vector<1x512x36xbf16>
    %1 = vector.shape_cast %0 : vector<1x512x36xbf16> to vector<512x36xbf16>
    %c0_2 = arith.constant 0 : index
    %c0_3 = arith.constant 0 : index
    %2 = vector.load %arg3[%c0_2, %c0_3] : memref<36x128xbf16, #tpu.memory_space<vmem>>, vector<36x128xbf16>
    %cst = arith.constant dense<0.000000e+00> : vector<512x128xf32>
    %3 = tpu.matmul %1, %2, %cst {dimension_numbers = #tpu.dot_dimension_numbers<[1], [0], [0], [1], [0, 0, 1, 1], [], []>} : vector<512x36xbf16>, vector<36x128xbf16>, vector<512x128xf32> -> vector<512x128xf32>
    %c0_4 = arith.constant 0 : index
    %c0_5 = arith.constant 0 : index
    %4 = vector.load %arg4[%c0_4, %c0_5] : memref<1x128xf32, #tpu.memory_space<vmem>>, vector<1x128xf32>
    %5 = vector.broadcast %4 : vector<1x128xf32> to vector<512x128xf32>
    %6 = arith.addf %3, %5 : vector<512x128xf32>
    %cst_6 = arith.constant dense<0.000000e+00> : vector<128xf32>
    %7 = vector.multi_reduction <add>, %6, %cst_6 [0] : vector<512x128xf32> to vector<128xf32>
    %8 = vector.shape_cast %7 : vector<128xf32> to vector<1x128xf32>
    %c0_7 = arith.constant 0 : index
    %c0_8 = arith.constant 0 : index
    %c0_9 = arith.constant 0 : index
    %c0_10 = arith.constant 0 : index
    %9 = vector.load %arg6[%c0_7, %c0_8, %c0_9, %c0_10] : memref<1x1x2x128xf32, #tpu.memory_space<vmem>>, vector<1x1x1x128xf32>
    %10 = vector.shape_cast %9 : vector<1x1x1x128xf32> to vector<1x128xf32>
    %11 = vector.shape_cast %8 : vector<1x128xf32> to vector<1x1x1x128xf32>
    tpu.vector_store %arg6[%c0_7, %c0_8, %c0_9, %c0_10], %11 {strides = array<i32>} : memref<1x1x2x128xf32, #tpu.memory_space<vmem>>, vector<1x1x1x128xf32>,
    %12 = arith.mulf %6, %6 : vector<512x128xf32>
    %cst_11 = arith.constant dense<0.000000e+00> : vector<128xf32>
    %13 = vector.multi_reduction <add>, %12, %cst_11 [0] : vector<512x128xf32> to vector<128xf32>
    %14 = vector.shape_cast %13 : vector<128xf32> to vector<1x128xf32>
    %c0_12 = arith.constant 0 : index
    %c0_13 = arith.constant 0 : index
    %c1 = arith.constant 1 : index
    %c0_14 = arith.constant 0 : index
    %15 = vector.load %arg6[%c0_12, %c0_13, %c1, %c0_14] : memref<1x1x2x128xf32, #tpu.memory_space<vmem>>, vector<1x1x1x128xf32>
    %16 = vector.shape_cast %15 : vector<1x1x1x128xf32> to vector<1x128xf32>
    %17 = vector.shape_cast %14 : vector<1x128xf32> to vector<1x1x1x128xf32>
    tpu.vector_store %arg6[%c0_12, %c0_13, %c1, %c0_14], %17 {strides = array<i32>} : memref<1x1x2x128xf32, #tpu.memory_space<vmem>>, vector<1x1x1x128xf32>,
    %18 = vector.extract_strided_slice %6 {offsets = [0, 0], sizes = [512, 8], strides = [1, 1]} : vector<512x128xf32> to vector<512x8xf32>
    %19 = arith.truncf %18 : vector<512x8xf32> to vector<512x8xbf16>
    %c0_15 = arith.constant 0 : index
    %c0_16 = arith.constant 0 : index
    %c0_17 = arith.constant 0 : index
    %20 = vector.load %arg5[%c0_15, %c0_16, %c0_17] : memref<1x512x8xbf16, #tpu.memory_space<vmem>>, vector<1x512x8xbf16>
    %21 = vector.shape_cast %20 : vector<1x512x8xbf16> to vector<512x8xbf16>
    %22 = vector.shape_cast %19 : vector<512x8xbf16> to vector<1x512x8xbf16>
    tpu.vector_store %arg5[%c0_15, %c0_16, %c0_17], %22 {strides = array<i32>} : memref<1x512x8xbf16, #tpu.memory_space<vmem>>, vector<1x512x8xbf16>,
    return
  }
  func.func @transform_0(%arg0: i32, %arg1: i32) -> (i32, i32, i32) {
    %c0_i32 = arith.constant 0 : i32
    %c0_i32_0 = arith.constant 0 : i32
    return %arg0, %arg1, %c0_i32 : i32, i32, i32
  }
  func.func @transform_1(%arg0: i32, %arg1: i32) -> (i32, i32) {
    %c0_i32 = arith.constant 0 : i32
    %c0_i32_0 = arith.constant 0 : i32
    %c0_i32_1 = arith.constant 0 : i32
    return %c0_i32, %c0_i32_0 : i32, i32
  }
  func.func @transform_2(%arg0: i32, %arg1: i32) -> (i32, i32) {
    %c0_i32 = arith.constant 0 : i32
    %c0_i32_0 = arith.constant 0 : i32
    %c0_i32_1 = arith.constant 0 : i32
    return %c0_i32, %c0_i32_0 : i32, i32
  }
  func.func @transform_3(%arg0: i32, %arg1: i32) -> (i32, i32, i32) {
    %c0_i32 = arith.constant 0 : i32
    %c0_i32_0 = arith.constant 0 : i32
    return %arg0, %arg1, %c0_i32 : i32, i32, i32
  }
  func.func @transform_4(%arg0: i32, %arg1: i32) -> (i32, i32, i32, i32) {
    %c0_i32 = arith.constant 0 : i32
    %c0_i32_0 = arith.constant 0 : i32
    %c0_i32_1 = arith.constant 0 : i32
    return %arg0, %arg1, %c0_i32, %c0_i32_0 : i32, i32, i32, i32
  }
}

module attributes {stable_mosaic.version = 11 : i64} {
  func.func @_bn_lrelu_kernel(%arg0: i32, %arg1: i32, %arg2: memref<1x512x8xbf16, #tpu.memory_space<vmem>>, %arg3: memref<1x8xf32, #tpu.memory_space<vmem>>, %arg4: memref<1x8xf32, #tpu.memory_space<vmem>>, %arg5: memref<1x512x8xf32, #tpu.memory_space<vmem>>) attributes {dimension_semantics = [#tpu.dimension_semantics<parallel>, #tpu.dimension_semantics<parallel>], iteration_bounds = array<i64: 2, 2>, scalar_prefetch = 0 : i64, scratch_operands = 0 : i64, tpu.core_type = #tpu.core_type<tc>, window_params = [{transform_indices = @transform_0, window_bounds = array<i64: 1, 512, 8>}, {pipeline_mode = #tpu.pipeline_mode<synchronous>, transform_indices = @transform_1, window_bounds = array<i64: 1, 8>}, {pipeline_mode = #tpu.pipeline_mode<synchronous>, transform_indices = @transform_2, window_bounds = array<i64: 1, 8>}, {transform_indices = @transform_3, window_bounds = array<i64: 1, 512, 8>}]} {
    %c0 = arith.constant 0 : index
    %c0_0 = arith.constant 0 : index
    %c0_1 = arith.constant 0 : index
    %0 = vector.load %arg2[%c0, %c0_0, %c0_1] : memref<1x512x8xbf16, #tpu.memory_space<vmem>>, vector<1x512x8xbf16>
    %1 = vector.shape_cast %0 : vector<1x512x8xbf16> to vector<512x8xbf16>
    %2 = arith.extf %1 : vector<512x8xbf16> to vector<512x8xf32>
    %c0_2 = arith.constant 0 : index
    %c0_3 = arith.constant 0 : index
    %3 = vector.load %arg3[%c0_2, %c0_3] : memref<1x8xf32, #tpu.memory_space<vmem>>, vector<1x8xf32>
    %4 = vector.broadcast %3 : vector<1x8xf32> to vector<512x8xf32>
    %5 = arith.mulf %2, %4 : vector<512x8xf32>
    %c0_4 = arith.constant 0 : index
    %c0_5 = arith.constant 0 : index
    %6 = vector.load %arg4[%c0_4, %c0_5] : memref<1x8xf32, #tpu.memory_space<vmem>>, vector<1x8xf32>
    %7 = vector.broadcast %6 : vector<1x8xf32> to vector<512x8xf32>
    %8 = arith.addf %5, %7 : vector<512x8xf32>
    %cst = arith.constant 0.000000e+00 : f32
    %9 = vector.broadcast %cst : f32 to vector<512x8xf32>
    %10 = arith.cmpf oge, %8, %9 : vector<512x8xf32>
    %cst_6 = arith.constant 0.00999999977 : f32
    %11 = vector.broadcast %cst_6 : f32 to vector<512x8xf32>
    %12 = arith.mulf %11, %8 : vector<512x8xf32>
    %13 = arith.select %10, %8, %12 : vector<512x8xi1>, vector<512x8xf32>
    %c0_7 = arith.constant 0 : index
    %c0_8 = arith.constant 0 : index
    %c0_9 = arith.constant 0 : index
    %14 = vector.load %arg5[%c0_7, %c0_8, %c0_9] : memref<1x512x8xf32, #tpu.memory_space<vmem>>, vector<1x512x8xf32>
    %15 = vector.shape_cast %14 : vector<1x512x8xf32> to vector<512x8xf32>
    %16 = vector.shape_cast %13 : vector<512x8xf32> to vector<1x512x8xf32>
    tpu.vector_store %arg5[%c0_7, %c0_8, %c0_9], %16 {strides = array<i32>} : memref<1x512x8xf32, #tpu.memory_space<vmem>>, vector<1x512x8xf32>,
    return
  }
  func.func @transform_0(%arg0: i32, %arg1: i32) -> (i32, i32, i32) {
    %c0_i32 = arith.constant 0 : i32
    %c0_i32_0 = arith.constant 0 : i32
    return %arg0, %arg1, %c0_i32 : i32, i32, i32
  }
  func.func @transform_1(%arg0: i32, %arg1: i32) -> (i32, i32) {
    %c0_i32 = arith.constant 0 : i32
    %c0_i32_0 = arith.constant 0 : i32
    %c0_i32_1 = arith.constant 0 : i32
    return %c0_i32, %c0_i32_0 : i32, i32
  }
  func.func @transform_2(%arg0: i32, %arg1: i32) -> (i32, i32) {
    %c0_i32 = arith.constant 0 : i32
    %c0_i32_0 = arith.constant 0 : i32
    %c0_i32_1 = arith.constant 0 : i32
    return %c0_i32, %c0_i32_0 : i32, i32
  }
  func.func @transform_3(%arg0: i32, %arg1: i32) -> (i32, i32, i32) {
    %c0_i32 = arith.constant 0 : i32
    %c0_i32_0 = arith.constant 0 : i32
    return %arg0, %arg1, %c0_i32 : i32, i32, i32
  }
}

</mosaic_0001>

<llo_original>
// kernel: upsample_forward.3
$region0: #{upsample_forward.3}
  #allocation0 [shape = 'u32[]', space=smem, size = 0x4, offset = 0x4, fixed_abs, tag = 'smem constant byte address 0x4 - core index']
  #allocation1 [shape = 'u32[144,128]{1,0:T(1,128)}', space=vmem, size = 0x12000, scoped, tag = 'internal scratch']
  %s0 = inlined_call_operand.vmem [shape: bf16[2,1024,8], index: 0, kind: input, shape index: {}]
  %s1 = inlined_call_operand.vmem [shape: f32[1,8], index: 1, kind: input, shape index: {}]
  %s2 = inlined_call_operand.vmem [shape: f32[1,8], index: 2, kind: input, shape index: {}]
  %s3 = inlined_call_operand.vmem [shape: f32[2,1024,8], index: 3, kind: output, shape index: {}]
  %s4 = sld [smem:[#allocation0]]
  $region45: #{upsample_forward.3} parent=0
    _
  %s6 = ssub.s32 1, %s4
  %s7 = scalar_select 0, %s6, %s4
  loop: start=0, step=1, limit=6
  $region2: #{upsample_forward.3} parent=0 // loop_pre_header
    _
  $region3: #{upsample_forward.3} parent=0 // loop_header
    %s9 = sphi 0, %s13
    %p10 = scmp.ge.s32.totalorder %s9, 6
    %s16 = sphi 0, %s28
    %s17 = sphi 0, %s24
    %s18 = sphi 0, %s16
    %s19 = sphi 0, %s17
    %s20 = sphi 0, %s18
    %s21 = sphi 0, %s19
    %s33 = sphi 0, %s35
    %s36 = sphi 0, %s33
    %s37 = sphi 0, %s36
    %s53 = sphi 0, %s37
    %s57 = sphi 0, %s57
    %s59 = sphi 0, %s57
    %s60 = sphi 0, %s59
    %s74 = sphi 0, %s60
    %s78 = sphi 0, %s78
    %s80 = sphi 0, %s78
    %s81 = sphi 0, %s80
    %s95 = sphi 0, %s81
    %s103 = sphi 0, %s105
    %s106 = sphi 0, %s103
    %s107 = sphi 0, %s106
    %s123 = sphi 0, %s107
  $region4: #{upsample_forward.3} parent=0 // loop_header_branch
    %12 = sbr.rel (%p10) target = $region8
  $region5: #{upsample_forward.3} parent=0 // loop_body
    %s14 = ssub.s32 %s9, 1
    %s15 = ssub.s32 %s9, 2
    %s22 = sadd.s32 1, %s17
    %p23 = scmp.ge.s32.totalorder %s22, 2
    %s24 = scalar_select %p23, 0, %s22
    %s25 = sadd.s32 1, %s16
    %s26 = scalar_select %p23, %s25, %s16
    %p27 = scmp.ge.s32.totalorder %s26, 2
    %s28 = scalar_select %p27, 0, %s26
    %s29 = ssub.s32 %s16, %s28
    %s30 = ssub.s32 %s17, %s24
    %s31 = sor.u32 %s29, %s30
    %p32 = scmp.eq.s32.totalorder %s31, 0
    %s34 = sadd.s32 %s33, 1
    %s35 = scalar_select %p32, %s33, %s34
    %p38 = pneg %p32
    %p39 = scmp.eq.s32.totalorder %s9, 3
    %p40 = por %p38, %p39
    %p41 = scmp.ne.s32.totalorder %s33, %s36
    %p42 = scmp.eq.s32.totalorder %s9, 0
    %p43 = por %p41, %p42
    %p44 = scmp.ne.s32.totalorder %s33, %s36
    %p45 = scmp.eq.s32.totalorder %s14, 3
    %p46 = por %p44, %p45
    %p47 = scmp.ne.s32.totalorder %s36, %s37
    %p48 = scmp.eq.s32.totalorder %s14, 0
    %p49 = por %p47, %p48
    %p50 = scmp.ne.s32.totalorder %s36, %s37
    %p51 = scmp.eq.s32.totalorder %s15, 3
    %p52 = por %p50, %p51
    %p54 = scmp.ne.s32.totalorder %s37, %s53
    %p55 = scmp.eq.s32.totalorder %s15, 0
    %p56 = por %p54, %p55
    %s58 = sadd.s32 %s57, 1
    %p61 = scmp.eq.s32.totalorder %s9, 3
    %p62 = scmp.ne.s32.totalorder %s57, %s59
    %p63 = scmp.eq.s32.totalorder %s9, 0
    %p64 = por %p62, %p63
    %p65 = scmp.ne.s32.totalorder %s57, %s59
    %p66 = scmp.eq.s32.totalorder %s14, 3
    %p67 = por %p65, %p66
    %p68 = scmp.ne.s32.totalorder %s59, %s60
    %p69 = scmp.eq.s32.totalorder %s14, 0
    %p70 = por %p68, %p69
    %p71 = scmp.ne.s32.totalorder %s59, %s60
    %p72 = scmp.eq.s32.totalorder %s15, 3
    %p73 = por %p71, %p72
    %p75 = scmp.ne.s32.totalorder %s60, %s74
    %p76 = scmp.eq.s32.totalorder %s15, 0
    %p77 = por %p75, %p76
    %s79 = sadd.s32 %s78, 1
    %p82 = scmp.eq.s32.totalorder %s9, 3
    %p83 = scmp.ne.s32.totalorder %s78, %s80
    %p84 = scmp.eq.s32.totalorder %s9, 0
    %p85 = por %p83, %p84
    %p86 = scmp.ne.s32.totalorder %s78, %s80
    %p87 = scmp.eq.s32.totalorder %s14, 3
    %p88 = por %p86, %p87
    %p89 = scmp.ne.s32.totalorder %s80, %s81
    %p90 = scmp.eq.s32.totalorder %s14, 0
    %p91 = por %p89, %p90
    %p92 = scmp.ne.s32.totalorder %s80, %s81
    %p93 = scmp.eq.s32.totalorder %s15, 3
    %p94 = por %p92, %p93
    %p96 = scmp.ne.s32.totalorder %s81, %s95
    %p97 = scmp.eq.s32.totalorder %s15, 0
    %p98 = por %p96, %p97
    %s99 = ssub.s32 %s16, %s28
    %s100 = ssub.s32 %s17, %s24
    %s101 = sor.u32 %s99, %s100
    %p102 = scmp.eq.s32.totalorder %s101, 0
    %s104 = sadd.s32 %s103, 1
    %s105 = scalar_select %p102, %s103, %s104
    %p108 = pneg %p102
    %p109 = scmp.eq.s32.totalorder %s9, 3
    %p110 = por %p108, %p109
    %p111 = scmp.ne.s32.totalorder %s103, %s106
    %p112 = scmp.eq.s32.totalorder %s9, 0
    %p113 = por %p111, %p112
    %p114 = scmp.ne.s32.totalorder %s103, %s106
    %p115 = scmp.eq.s32.totalorder %s14, 3
    %p116 = por %p114, %p115
    %p117 = scmp.ne.s32.totalorder %s106, %s107
    %p118 = scmp.eq.s32.totalorder %s14, 0
    %p119 = por %p117, %p118
    %p120 = scmp.ne.s32.totalorder %s106, %s107
    %p121 = scmp.eq.s32.totalorder %s15, 3
    %p122 = por %p120, %p121
    %p124 = scmp.ne.s32.totalorder %s107, %s123
    %p125 = scmp.eq.s32.totalorder %s15, 0
    %p126 = por %p124, %p125
    %p127 = scmp.le.s32.totalorder 1, %s9
    %p128 = scmp.lt.s32.totalorder %s9, 5
    %p129 = pnand %p127, %p128
    %p130 = pneg %p129
    // Predicated region
    $region9: #{upsample_forward.3} parent=5 // pred_check
      _
    $region10: #{upsample_forward.3} parent=5 // pred_check_branch
      %132 = sbr.rel (%p129) target = $region12
    $region11: #{upsample_forward.3} parent=5 // pred_region
      %s133 = ssub.s32 %s9, 1
      // Predicated region
      $region13: #{upsample_forward.3} parent=11 // pred_check
        %p134 = pneg %p70
      $region14: #{upsample_forward.3} parent=11 // pred_check_branch
        %136 = sbr.rel (%p134) target = $region16
      $region15: #{upsample_forward.3} parent=11 // pred_region
        _
      $region16: #{upsample_forward.3} parent=11 // pred_fallthru
        _
      // Predicated region
      $region17: #{upsample_forward.3} parent=11 // pred_check
        %p137 = pneg %p91
      $region18: #{upsample_forward.3} parent=11 // pred_check_branch
        %139 = sbr.rel (%p137) target = $region20
      $region19: #{upsample_forward.3} parent=11 // pred_region
        _
      $region20: #{upsample_forward.3} parent=11 // pred_fallthru
        _
    $region12: #{upsample_forward.3} parent=5 // pred_fallthru
      _
    %p140 = scmp.lt.s32.totalorder %s9, 4
    // Predicated region
    $region21: #{upsample_forward.3} parent=5 // pred_check
      %p141 = pneg %p140
    $region22: #{upsample_forward.3} parent=5 // pred_check_branch
      %143 = sbr.rel (%p141) target = $region24
    $region23: #{upsample_forward.3} parent=5 // pred_region
      // Predicated region
      $region25: #{upsample_forward.3} parent=23 // pred_check
        %p144 = pneg %p43
      $region26: #{upsample_forward.3} parent=23 // pred_check_branch
        %146 = sbr.rel (%p144) target = $region28
      $region27: #{upsample_forward.3} parent=23 // pred_region
        %s147 = smul.u32 64, %s17
        %p148 = scmp.lt.s32.totalorder %s16, 1
        %s149 = scalar_select %p148, %s16, 1
        %p150 = scmp.lt.s32.totalorder %s147, 127
        %s151 = scalar_select %p150, %s147, 127
        %s152 = smul.addr %s149, 128
        %s153 = sadd.s32 %s151, %s152
        %s154 = smul.addr %s153, 4
        %s155 = scalar_lea.vmem %s0, %s154
        %s156 = smul.u32 64, %s17
      $region28: #{upsample_forward.3} parent=23 // pred_fallthru
        _
    $region24: #{upsample_forward.3} parent=5 // pred_fallthru
      _
    %p157 = scmp.le.s32.totalorder 1, %s9
    %p158 = scmp.lt.s32.totalorder %s9, 5
    %p159 = pnand %p157, %p158
    %p160 = pneg %p159
    // Predicated region
    $region29: #{upsample_forward.3} parent=5 // pred_check
      _
    $region30: #{upsample_forward.3} parent=5 // pred_check_branch
      %162 = sbr.rel (%p159) target = $region32
    $region31: #{upsample_forward.3} parent=5 // pred_region
      %s163 = ssub.s32 %s9, 1
      %s164 = smul.u32 64, %s19
      %p165 = scmp.lt.s32.totalorder %s18, 1
      %s166 = scalar_select %p165, %s18, 1
      %p167 = scmp.lt.s32.totalorder %s164, 127
      %s168 = scalar_select %p167, %s164, 127
      %s169 = smul.addr %s166, 128
      %s170 = sadd.s32 %s168, %s169
      %s171 = smul.addr %s170, 4
      %s172 = scalar_lea.vmem %s0, %s171
      %p173 = pneg %p49
      %p174 = pneg %p46
      %p175 = pneg %p70
      %p176 = pneg %p67
      %p177 = pneg %p91
      %p178 = pneg %p88
      %p179 = pneg %p119
      %p180 = pneg %p116
      %s181 = smul.u32 64, %s19
      %p182 = scmp.lt.s32.totalorder %s18, 1
      %s183 = scalar_select %p182, %s18, 1
      %p184 = scmp.lt.s32.totalorder %s181, 127
      %s185 = scalar_select %p184, %s181, 127
      %s186 = smul.addr %s183, 128
      %s187 = sadd.s32 %s185, %s186
      %s188 = smul.addr %s187, 8
      %s189 = scalar_lea.vmem %s3, %s188
      %s190 = smul.u32 64, %s19
      %p191 = scmp.lt.s32.totalorder %s18, 1
      %s192 = scalar_select %p191, %s18, 1
      %p193 = scmp.lt.s32.totalorder %s190, 127
      %s194 = scalar_select %p193, %s190, 127
      %s195 = smul.addr %s192, 128
      %s196 = sadd.s32 %s194, %s195
      %s197 = smul.addr %s196, 4
      %s198 = scalar_lea.vmem %s0, %s197
      %s199 = smul.u32 64, %s19
      %s200 = smul.u32 64, %s19
      %p201 = scmp.lt.s32.totalorder %s18, 1
      %s202 = scalar_select %p201, %s18, 1
      %p203 = scmp.lt.s32.totalorder %s200, 127
      %s204 = scalar_select %p203, %s200, 127
      %s205 = smul.addr %s202, 128
      %s206 = sadd.s32 %s204, %s205
      %s207 = smul.addr %s206, 8
      %s208 = scalar_lea.vmem %s3, %s207
      %s209 = smul.u32 64, %s19
      %v210 = vld [vmem:[%s198] sm:$0xf]
      %v211 = vld [vmem:[%s198 + $0x4] sm:$0xf]
      %v212 = vld [vmem:[%s198 + $0x8] sm:$0xf]
      %v213 = vld [vmem:[%s198 + $0xc] sm:$0xf]
      %v214 = vld [vmem:[%s198 + $0x10] sm:$0xf]
      %v215 = vld [vmem:[%s198 + $0x14] sm:$0xf]
      %v216 = vld [vmem:[%s198 + $0x18] sm:$0xf]
      %v217 = vld [vmem:[%s198 + $0x1c] sm:$0xf]
      %v218 = vld [vmem:[%s198 + $0x20] sm:$0xf]
      %v219 = vld [vmem:[%s198 + $0x24] sm:$0xf]
      %v220 = vld [vmem:[%s198 + $0x28] sm:$0xf]
      %v221 = vld [vmem:[%s198 + $0x2c] sm:$0xf]
      %v222 = vld [vmem:[%s198 + $0x30] sm:$0xf]
      %v223 = vld [vmem:[%s198 + $0x34] sm:$0xf]
      %v224 = vld [vmem:[%s198 + $0x38] sm:$0xf]
      %v225 = vld [vmem:[%s198 + $0x3c] sm:$0xf]
      %v226 = vld [vmem:[%s198 + $0x40] sm:$0xf]
      %v227 = vld [vmem:[%s198 + $0x44] sm:$0xf]
      %v228 = vld [vmem:[%s198 + $0x48] sm:$0xf]
      %v229 = vld [vmem:[%s198 + $0x4c] sm:$0xf]
      %v230 = vld [vmem:[%s198 + $0x50] sm:$0xf]
      %v231 = vld [vmem:[%s198 + $0x54] sm:$0xf]
      %v232 = vld [vmem:[%s198 + $0x58] sm:$0xf]
      %v233 = vld [vmem:[%s198 + $0x5c] sm:$0xf]
      %v234 = vld [vmem:[%s198 + $0x60] sm:$0xf]
      %v235 = vld [vmem:[%s198 + $0x64] sm:$0xf]
      %v236 = vld [vmem:[%s198 + $0x68] sm:$0xf]
      %v237 = vld [vmem:[%s198 + $0x6c] sm:$0xf]
      %v238 = vld [vmem:[%s198 + $0x70] sm:$0xf]
      %v239 = vld [vmem:[%s198 + $0x74] sm:$0xf]
      %v240 = vld [vmem:[%s198 + $0x78] sm:$0xf]
      %v241 = vld [vmem:[%s198 + $0x7c] sm:$0xf]
      %v242 = vld [vmem:[%s198 + $0x80] sm:$0xf]
      %v243 = vld [vmem:[%s198 + $0x84] sm:$0xf]
      %v244 = vld [vmem:[%s198 + $0x88] sm:$0xf]
      %v245 = vld [vmem:[%s198 + $0x8c] sm:$0xf]
      %v246 = vld [vmem:[%s198 + $0x90] sm:$0xf]
      %v247 = vld [vmem:[%s198 + $0x94] sm:$0xf]
      %v248 = vld [vmem:[%s198 + $0x98] sm:$0xf]
      %v249 = vld [vmem:[%s198 + $0x9c] sm:$0xf]
      %v250 = vld [vmem:[%s198 + $0xa0] sm:$0xf]
      %v251 = vld [vmem:[%s198 + $0xa4] sm:$0xf]
      %v252 = vld [vmem:[%s198 + $0xa8] sm:$0xf]
      %v253 = vld [vmem:[%s198 + $0xac] sm:$0xf]
      %v254 = vld [vmem:[%s198 + $0xb0] sm:$0xf]
      %v255 = vld [vmem:[%s198 + $0xb4] sm:$0xf]
      %v256 = vld [vmem:[%s198 + $0xb8] sm:$0xf]
      %v257 = vld [vmem:[%s198 + $0xbc] sm:$0xf]
      %v258 = vld [vmem:[%s198 + $0xc0] sm:$0xf]
      %v259 = vld [vmem:[%s198 + $0xc4] sm:$0xf]
      %v260 = vld [vmem:[%s198 + $0xc8] sm:$0xf]
      %v261 = vld [vmem:[%s198 + $0xcc] sm:$0xf]
      %v262 = vld [vmem:[%s198 + $0xd0] sm:$0xf]
      %v263 = vld [vmem:[%s198 + $0xd4] sm:$0xf]
      %v264 = vld [vmem:[%s198 + $0xd8] sm:$0xf]
      %v265 = vld [vmem:[%s198 + $0xdc] sm:$0xf]
      %v266 = vld [vmem:[%s198 + $0xe0] sm:$0xf]
      %v267 = vld [vmem:[%s198 + $0xe4] sm:$0xf]
      %v268 = vld [vmem:[%s198 + $0xe8] sm:$0xf]
      %v269 = vld [vmem:[%s198 + $0xec] sm:$0xf]
      %v270 = vld [vmem:[%s198 + $0xf0] sm:$0xf]
      %v271 = vld [vmem:[%s198 + $0xf4] sm:$0xf]
      %v272 = vld [vmem:[%s198 + $0xf8] sm:$0xf]
      %v273 = vld [vmem:[%s198 + $0xfc] sm:$0xf]
      %v274 = vunpack.c.l.bf16 %v210
      %v275 = vunpack.c.l.bf16 %v211
      %v276 = vunpack.c.l.bf16 %v212
      %v277 = vunpack.c.l.bf16 %v213
      %v278 = vunpack.c.l.bf16 %v214
      %v279 = vunpack.c.l.bf16 %v215
      %v280 = vunpack.c.l.bf16 %v216
      %v281 = vunpack.c.l.bf16 %v217
      %v282 = vunpack.c.l.bf16 %v218
      %v283 = vunpack.c.l.bf16 %v219
      %v284 = vunpack.c.l.bf16 %v220
      %v285 = vunpack.c.l.bf16 %v221
      %v286 = vunpack.c.l.bf16 %v222
      %v287 = vunpack.c.l.bf16 %v223
      %v288 = vunpack.c.l.bf16 %v224
      %v289 = vunpack.c.l.bf16 %v225
      %v290 = vunpack.c.l.bf16 %v226
      %v291 = vunpack.c.l.bf16 %v227
      %v292 = vunpack.c.l.bf16 %v228
      %v293 = vunpack.c.l.bf16 %v229
      %v294 = vunpack.c.l.bf16 %v230
      %v295 = vunpack.c.l.bf16 %v231
      %v296 = vunpack.c.l.bf16 %v232
      %v297 = vunpack.c.l.bf16 %v233
      %v298 = vunpack.c.l.bf16 %v234
      %v299 = vunpack.c.l.bf16 %v235
      %v300 = vunpack.c.l.bf16 %v236
      %v301 = vunpack.c.l.bf16 %v237
      %v302 = vunpack.c.l.bf16 %v238
      %v303 = vunpack.c.l.bf16 %v239
      %v304 = vunpack.c.l.bf16 %v240
      %v305 = vunpack.c.l.bf16 %v241
      %v306 = vunpack.c.l.bf16 %v242
      %v307 = vunpack.c.l.bf16 %v243
      %v308 = vunpack.c.l.bf16 %v244
      %v309 = vunpack.c.l.bf16 %v245
      %v310 = vunpack.c.l.bf16 %v246
      %v311 = vunpack.c.l.bf16 %v247
      %v312 = vunpack.c.l.bf16 %v248
      %v313 = vunpack.c.l.bf16 %v249
      %v314 = vunpack.c.l.bf16 %v250
      %v315 = vunpack.c.l.bf16 %v251
      %v316 = vunpack.c.l.bf16 %v252
      %v317 = vunpack.c.l.bf16 %v253
      %v318 = vunpack.c.l.bf16 %v254
      %v319 = vunpack.c.l.bf16 %v255
      %v320 = vunpack.c.l.bf16 %v256
      %v321 = vunpack.c.l.bf16 %v257
      %v322 = vunpack.c.l.bf16 %v258
      %v323 = vunpack.c.l.bf16 %v259
      %v324 = vunpack.c.l.bf16 %v260
      %v325 = vunpack.c.l.bf16 %v261
      %v326 = vunpack.c.l.bf16 %v262
      %v327 = vunpack.c.l.bf16 %v263
      %v328 = vunpack.c.l.bf16 %v264
      %v329 = vunpack.c.l.bf16 %v265
      %v330 = vunpack.c.l.bf16 %v266
      %v331 = vunpack.c.l.bf16 %v267
      %v332 = vunpack.c.l.bf16 %v268
      %v333 = vunpack.c.l.bf16 %v269
      %v334 = vunpack.c.l.bf16 %v270
      %v335 = vunpack.c.l.bf16 %v271
      %v336 = vunpack.c.l.bf16 %v272
      %v337 = vunpack.c.l.bf16 %v273
      %v338 = vld [vmem:[%s1] sm:$0x1]
      %v340 = vlaneseq
      %v341 = vshrl.u32 %v340, 7
      %v342 = vsub.s32 0, %v341
      %v343 = vrot.slane %v338, %v342
      %v345 = vmul.f32 %v274, %v343
      %v346 = vmul.f32 %v275, %v343
      %v347 = vmul.f32 %v276, %v343
      %v348 = vmul.f32 %v277, %v343
      %v349 = vmul.f32 %v278, %v343
      %v350 = vmul.f32 %v279, %v343
      %v351 = vmul.f32 %v280, %v343
      %v352 = vmul.f32 %v281, %v343
      %v353 = vmul.f32 %v282, %v343
      %v354 = vmul.f32 %v283, %v343
      %v355 = vmul.f32 %v284, %v343
      %v356 = vmul.f32 %v285, %v343
      %v357 = vmul.f32 %v286, %v343
      %v358 = vmul.f32 %v287, %v343
      %v359 = vmul.f32 %v288, %v343
      %v360 = vmul.f32 %v289, %v343
      %v361 = vmul.f32 %v290, %v343
      %v362 = vmul.f32 %v291, %v343
      %v363 = vmul.f32 %v292, %v343
      %v364 = vmul.f32 %v293, %v343
      %v365 = vmul.f32 %v294, %v343
      %v366 = vmul.f32 %v295, %v343
      %v367 = vmul.f32 %v296, %v343
      %v368 = vmul.f32 %v297, %v343
      %v369 = vmul.f32 %v298, %v343
      %v370 = vmul.f32 %v299, %v343
      %v371 = vmul.f32 %v300, %v343
      %v372 = vmul.f32 %v301, %v343
      %v373 = vmul.f32 %v302, %v343
      %v374 = vmul.f32 %v303, %v343
      %v375 = vmul.f32 %v304, %v343
      %v376 = vmul.f32 %v305, %v343
      %v377 = vmul.f32 %v306, %v343
      %v378 = vmul.f32 %v307, %v343
      %v379 = vmul.f32 %v308, %v343
      %v380 = vmul.f32 %v309, %v343
      %v381 = vmul.f32 %v310, %v343
      %v382 = vmul.f32 %v311, %v343
      %v383 = vmul.f32 %v312, %v343
      %v384 = vmul.f32 %v313, %v343
      %v385 = vmul.f32 %v314, %v343
      %v386 = vmul.f32 %v315, %v343
      %v387 = vmul.f32 %v316, %v343
      %v388 = vmul.f32 %v317, %v343
      %v389 = vmul.f32 %v318, %v343
      %v390 = vmul.f32 %v319, %v343
      %v391 = vmul.f32 %v320, %v343
      %v392 = vmul.f32 %v321, %v343
      %v393 = vmul.f32 %v322, %v343
      %v394 = vmul.f32 %v323, %v343
      %v395 = vmul.f32 %v324, %v343
      %v396 = vmul.f32 %v325, %v343
      %v397 = vmul.f32 %v326, %v343
      %v398 = vmul.f32 %v327, %v343
      %v399 = vmul.f32 %v328, %v343
      %v400 = vmul.f32 %v329, %v343
      %v401 = vmul.f32 %v330, %v343
      %v402 = vmul.f32 %v331, %v343
      %v403 = vmul.f32 %v332, %v343
      %v404 = vmul.f32 %v333, %v343
      %v405 = vmul.f32 %v334, %v343
      %v406 = vmul.f32 %v335, %v343
      %v407 = vmul.f32 %v336, %v343
      %v408 = vmul.f32 %v337, %v343
      %v409 = vld [vmem:[%s2] sm:$0x1]
      %v411 = vlaneseq
      %v412 = vshrl.u32 %v411, 7
      %v413 = vsub.s32 0, %v412
      %v414 = vrot.slane %v409, %v413
      %v416 = vadd.f32 %v345, %v414
      %v417 = vadd.f32 %v346, %v414
      %v418 = vadd.f32 %v347, %v414
      %v419 = vadd.f32 %v348, %v414
      %v420 = vadd.f32 %v349, %v414
      %v421 = vadd.f32 %v350, %v414
      %v422 = vadd.f32 %v351, %v414
      %v423 = vadd.f32 %v352, %v414
      %v424 = vadd.f32 %v353, %v414
      %v425 = vadd.f32 %v354, %v414
      %v426 = vadd.f32 %v355, %v414
      %v427 = vadd.f32 %v356, %v414
      %v428 = vadd.f32 %v357, %v414
      %v429 = vadd.f32 %v358, %v414
      %v430 = vadd.f32 %v359, %v414
      %v431 = vadd.f32 %v360, %v414
      %v432 = vadd.f32 %v361, %v414
      %v433 = vadd.f32 %v362, %v414
      %v434 = vadd.f32 %v363, %v414
      %v435 = vadd.f32 %v364, %v414
      %v436 = vadd.f32 %v365, %v414
      %v437 = vadd.f32 %v366, %v414
      %v438 = vadd.f32 %v367, %v414
      %v439 = vadd.f32 %v368, %v414
      %v440 = vadd.f32 %v369, %v414
      %v441 = vadd.f32 %v370, %v414
      %v442 = vadd.f32 %v371, %v414
      %v443 = vadd.f32 %v372, %v414
      %v444 = vadd.f32 %v373, %v414
      %v445 = vadd.f32 %v374, %v414
      %v446 = vadd.f32 %v375, %v414
      %v447 = vadd.f32 %v376, %v414
      %v448 = vadd.f32 %v377, %v414
      %v449 = vadd.f32 %v378, %v414
      %v450 = vadd.f32 %v379, %v414
      %v451 = vadd.f32 %v380, %v414
      %v452 = vadd.f32 %v381, %v414
      %v453 = vadd.f32 %v382, %v414
      %v454 = vadd.f32 %v383, %v414
      %v455 = vadd.f32 %v384, %v414
      %v456 = vadd.f32 %v385, %v414
      %v457 = vadd.f32 %v386, %v414
      %v458 = vadd.f32 %v387, %v414
      %v459 = vadd.f32 %v388, %v414
      %v460 = vadd.f32 %v389, %v414
      %v461 = vadd.f32 %v390, %v414
      %v462 = vadd.f32 %v391, %v414
      %v463 = vadd.f32 %v392, %v414
      %v464 = vadd.f32 %v393, %v414
      %v465 = vadd.f32 %v394, %v414
      %v466 = vadd.f32 %v395, %v414
      %v467 = vadd.f32 %v396, %v414
      %v468 = vadd.f32 %v397, %v414
      %v469 = vadd.f32 %v398, %v414
      %v470 = vadd.f32 %v399, %v414
      %v471 = vadd.f32 %v400, %v414
      %v472 = vadd.f32 %v401, %v414
      %v473 = vadd.f32 %v402, %v414
      %v474 = vadd.f32 %v403, %v414
      %v475 = vadd.f32 %v404, %v414
      %v476 = vadd.f32 %v405, %v414
      %v477 = vadd.f32 %v406, %v414
      %v478 = vadd.f32 %v407, %v414
      %v479 = vadd.f32 %v408, %v414
      %vm480 = vcmp.ge.f32.partialorder %v416, 0.0
      %vm481 = vcmp.ge.f32.partialorder %v417, 0.0
      %vm482 = vcmp.ge.f32.partialorder %v418, 0.0
      %vm483 = vcmp.ge.f32.partialorder %v419, 0.0
      %vm484 = vcmp.ge.f32.partialorder %v420, 0.0
      %vm485 = vcmp.ge.f32.partialorder %v421, 0.0
      %vm486 = vcmp.ge.f32.partialorder %v422, 0.0
      %vm487 = vcmp.ge.f32.partialorder %v423, 0.0
      %vm488 = vcmp.ge.f32.partialorder %v424, 0.0
      %vm489 = vcmp.ge.f32.partialorder %v425, 0.0
      %vm490 = vcmp.ge.f32.partialorder %v426, 0.0
      %vm491 = vcmp.ge.f32.partialorder %v427, 0.0
      %vm492 = vcmp.ge.f32.partialorder %v428, 0.0
      %vm493 = vcmp.ge.f32.partialorder %v429, 0.0
      %vm494 = vcmp.ge.f32.partialorder %v430, 0.0
      %vm495 = vcmp.ge.f32.partialorder %v431, 0.0
      %vm496 = vcmp.ge.f32.partialorder %v432, 0.0
      %vm497 = vcmp.ge.f32.partialorder %v433, 0.0
      %vm498 = vcmp.ge.f32.partialorder %v434, 0.0
      %vm499 = vcmp.ge.f32.partialorder %v435, 0.0
      %vm500 = vcmp.ge.f32.partialorder %v436, 0.0
      %vm501 = vcmp.ge.f32.partialorder %v437, 0.0
      %vm502 = vcmp.ge.f32.partialorder %v438, 0.0
      %vm503 = vcmp.ge.f32.partialorder %v439, 0.0
      %vm504 = vcmp.ge.f32.partialorder %v440, 0.0
      %vm505 = vcmp.ge.f32.partialorder %v441, 0.0
      %vm506 = vcmp.ge.f32.partialorder %v442, 0.0
      %vm507 = vcmp.ge.f32.partialorder %v443, 0.0
      %vm508 = vcmp.ge.f32.partialorder %v444, 0.0
      %vm509 = vcmp.ge.f32.partialorder %v445, 0.0
      %vm510 = vcmp.ge.f32.partialorder %v446, 0.0
      %vm511 = vcmp.ge.f32.partialorder %v447, 0.0
      %vm512 = vcmp.ge.f32.partialorder %v448, 0.0
      %vm513 = vcmp.ge.f32.partialorder %v449, 0.0
      %vm514 = vcmp.ge.f32.partialorder %v450, 0.0
      %vm515 = vcmp.ge.f32.partialorder %v451, 0.0
      %vm516 = vcmp.ge.f32.partialorder %v452, 0.0
      %vm517 = vcmp.ge.f32.partialorder %v453, 0.0
      %vm518 = vcmp.ge.f32.partialorder %v454, 0.0
      %vm519 = vcmp.ge.f32.partialorder %v455, 0.0
      %vm520 = vcmp.ge.f32.partialorder %v456, 0.0
      %vm521 = vcmp.ge.f32.partialorder %v457, 0.0
      %vm522 = vcmp.ge.f32.partialorder %v458, 0.0
      %vm523 = vcmp.ge.f32.partialorder %v459, 0.0
      %vm524 = vcmp.ge.f32.partialorder %v460, 0.0
      %vm525 = vcmp.ge.f32.partialorder %v461, 0.0
      %vm526 = vcmp.ge.f32.partialorder %v462, 0.0
      %vm527 = vcmp.ge.f32.partialorder %v463, 0.0
      %vm528 = vcmp.ge.f32.partialorder %v464, 0.0
      %vm529 = vcmp.ge.f32.partialorder %v465, 0.0
      %vm530 = vcmp.ge.f32.partialorder %v466, 0.0
      %vm531 = vcmp.ge.f32.partialorder %v467, 0.0
      %vm532 = vcmp.ge.f32.partialorder %v468, 0.0
      %vm533 = vcmp.ge.f32.partialorder %v469, 0.0
      %vm534 = vcmp.ge.f32.partialorder %v470, 0.0
      %vm535 = vcmp.ge.f32.partialorder %v471, 0.0
      %vm536 = vcmp.ge.f32.partialorder %v472, 0.0
      %vm537 = vcmp.ge.f32.partialorder %v473, 0.0
      %vm538 = vcmp.ge.f32.partialorder %v474, 0.0
      %vm539 = vcmp.ge.f32.partialorder %v475, 0.0
      %vm540 = vcmp.ge.f32.partialorder %v476, 0.0
      %vm541 = vcmp.ge.f32.partialorder %v477, 0.0
      %vm542 = vcmp.ge.f32.partialorder %v478, 0.0
      %vm543 = vcmp.ge.f32.partialorder %v479, 0.0
      %v544 = vmul.f32 %v416, 0.01
      %v545 = vmul.f32 %v417, 0.01
      %v546 = vmul.f32 %v418, 0.01
      %v547 = vmul.f32 %v419, 0.01
      %v548 = vmul.f32 %v420, 0.01
      %v549 = vmul.f32 %v421, 0.01
      %v550 = vmul.f32 %v422, 0.01
      %v551 = vmul.f32 %v423, 0.01
      %v552 = vmul.f32 %v424, 0.01
      %v553 = vmul.f32 %v425, 0.01
      %v554 = vmul.f32 %v426, 0.01
      %v555 = vmul.f32 %v427, 0.01
      %v556 = vmul.f32 %v428, 0.01
      %v557 = vmul.f32 %v429, 0.01
      %v558 = vmul.f32 %v430, 0.01
      %v559 = vmul.f32 %v431, 0.01
      %v560 = vmul.f32 %v432, 0.01
      %v561 = vmul.f32 %v433, 0.01
      %v562 = vmul.f32 %v434, 0.01
      %v563 = vmul.f32 %v435, 0.01
      %v564 = vmul.f32 %v436, 0.01
      %v565 = vmul.f32 %v437, 0.01
      %v566 = vmul.f32 %v438, 0.01
      %v567 = vmul.f32 %v439, 0.01
      %v568 = vmul.f32 %v440, 0.01
      %v569 = vmul.f32 %v441, 0.01
      %v570 = vmul.f32 %v442, 0.01
      %v571 = vmul.f32 %v443, 0.01
      %v572 = vmul.f32 %v444, 0.01
      %v573 = vmul.f32 %v445, 0.01
      %v574 = vmul.f32 %v446, 0.01
      %v575 = vmul.f32 %v447, 0.01
      %v576 = vmul.f32 %v448, 0.01
      %v577 = vmul.f32 %v449, 0.01
      %v578 = vmul.f32 %v450, 0.01
      %v579 = vmul.f32 %v451, 0.01
      %v580 = vmul.f32 %v452, 0.01
      %v581 = vmul.f32 %v453, 0.01
      %v582 = vmul.f32 %v454, 0.01
      %v583 = vmul.f32 %v455, 0.01
      %v584 = vmul.f32 %v456, 0.01
      %v585 = vmul.f32 %v457, 0.01
      %v586 = vmul.f32 %v458, 0.01
      %v587 = vmul.f32 %v459, 0.01
      %v588 = vmul.f32 %v460, 0.01
      %v589 = vmul.f32 %v461, 0.01
      %v590 = vmul.f32 %v462, 0.01
      %v591 = vmul.f32 %v463, 0.01
      %v592 = vmul.f32 %v464, 0.01
      %v593 = vmul.f32 %v465, 0.01
      %v594 = vmul.f32 %v466, 0.01
      %v595 = vmul.f32 %v467, 0.01
      %v596 = vmul.f32 %v468, 0.01
      %v597 = vmul.f32 %v469, 0.01
      %v598 = vmul.f32 %v470, 0.01
      %v599 = vmul.f32 %v471, 0.01
      %v600 = vmul.f32 %v472, 0.01
      %v601 = vmul.f32 %v473, 0.01
      %v602 = vmul.f32 %v474, 0.01
      %v603 = vmul.f32 %v475, 0.01
      %v604 = vmul.f32 %v476, 0.01
      %v605 = vmul.f32 %v477, 0.01
      %v606 = vmul.f32 %v478, 0.01
      %v607 = vmul.f32 %v479, 0.01
      %v608 = vsel %vm480, %v416, %v544
      %v609 = vsel %vm481, %v417, %v545
      %v610 = vsel %vm482, %v418, %v546
      %v611 = vsel %vm483, %v419, %v547
      %v612 = vsel %vm484, %v420, %v548
      %v613 = vsel %vm485, %v421, %v549
      %v614 = vsel %vm486, %v422, %v550
      %v615 = vsel %vm487, %v423, %v551
      %v616 = vsel %vm488, %v424, %v552
      %v617 = vsel %vm489, %v425, %v553
      %v618 = vsel %vm490, %v426, %v554
      %v619 = vsel %vm491, %v427, %v555
      %v620 = vsel %vm492, %v428, %v556
      %v621 = vsel %vm493, %v429, %v557
      %v622 = vsel %vm494, %v430, %v558
      %v623 = vsel %vm495, %v431, %v559
      %v624 = vsel %vm496, %v432, %v560
      %v625 = vsel %vm497, %v433, %v561
      %v626 = vsel %vm498, %v434, %v562
      %v627 = vsel %vm499, %v435, %v563
      %v628 = vsel %vm500, %v436, %v564
      %v629 = vsel %vm501, %v437, %v565
      %v630 = vsel %vm502, %v438, %v566
      %v631 = vsel %vm503, %v439, %v567
      %v632 = vsel %vm504, %v440, %v568
      %v633 = vsel %vm505, %v441, %v569
      %v634 = vsel %vm506, %v442, %v570
      %v635 = vsel %vm507, %v443, %v571
      %v636 = vsel %vm508, %v444, %v572
      %v637 = vsel %vm509, %v445, %v573
      %v638 = vsel %vm510, %v446, %v574
      %v639 = vsel %vm511, %v447, %v575
      %v640 = vsel %vm512, %v448, %v576
      %v641 = vsel %vm513, %v449, %v577
      %v642 = vsel %vm514, %v450, %v578
      %v643 = vsel %vm515, %v451, %v579
      %v644 = vsel %vm516, %v452, %v580
      %v645 = vsel %vm517, %v453, %v581
      %v646 = vsel %vm518, %v454, %v582
      %v647 = vsel %vm519, %v455, %v583
      %v648 = vsel %vm520, %v456, %v584
      %v649 = vsel %vm521, %v457, %v585
      %v650 = vsel %vm522, %v458, %v586
      %v651 = vsel %vm523, %v459, %v587
      %v652 = vsel %vm524, %v460, %v588
      %v653 = vsel %vm525, %v461, %v589
      %v654 = vsel %vm526, %v462, %v590
      %v655 = vsel %vm527, %v463, %v591
      %v656 = vsel %vm528, %v464, %v592
      %v657 = vsel %vm529, %v465, %v593
      %v658 = vsel %vm530, %v466, %v594
      %v659 = vsel %vm531, %v467, %v595
      %v660 = vsel %vm532, %v468, %v596
      %v661 = vsel %vm533, %v469, %v597
      %v662 = vsel %vm534, %v470, %v598
      %v663 = vsel %vm535, %v471, %v599
      %v664 = vsel %vm536, %v472, %v600
      %v665 = vsel %vm537, %v473, %v601
      %v666 = vsel %vm538, %v474, %v602
      %v667 = vsel %vm539, %v475, %v603
      %v668 = vsel %vm540, %v476, %v604
      %v669 = vsel %vm541, %v477, %v605
      %v670 = vsel %vm542, %v478, %v606
      %v671 = vsel %vm543, %v479, %v607
      %vm672 = vcmask 64512
      %673 = vst.msk [vmem:[%s208] sm:$0xff] %vm672, %v608
      %674 = vst.msk [vmem:[%s208 + $0x8] sm:$0xff] %vm672, %v609
      %675 = vst.msk [vmem:[%s208 + $0x10] sm:$0xff] %vm672, %v610
      %676 = vst.msk [vmem:[%s208 + $0x18] sm:$0xff] %vm672, %v611
      %677 = vst.msk [vmem:[%s208 + $0x20] sm:$0xff] %vm672, %v612
      %678 = vst.msk [vmem:[%s208 + $0x28] sm:$0xff] %vm672, %v613
      %679 = vst.msk [vmem:[%s208 + $0x30] sm:$0xff] %vm672, %v614
      %680 = vst.msk [vmem:[%s208 + $0x38] sm:$0xff] %vm672, %v615
      %681 = vst.msk [vmem:[%s208 + $0x40] sm:$0xff] %vm672, %v616
      %682 = vst.msk [vmem:[%s208 + $0x48] sm:$0xff] %vm672, %v617
      %683 = vst.msk [vmem:[%s208 + $0x50] sm:$0xff] %vm672, %v618
      %684 = vst.msk [vmem:[%s208 + $0x58] sm:$0xff] %vm672, %v619
      %685 = vst.msk [vmem:[%s208 + $0x60] sm:$0xff] %vm672, %v620
      %686 = vst.msk [vmem:[%s208 + $0x68] sm:$0xff] %vm672, %v621
      %687 = vst.msk [vmem:[%s208 + $0x70] sm:$0xff] %vm672, %v622
      %688 = vst.msk [vmem:[%s208 + $0x78] sm:$0xff] %vm672, %v623
      %689 = vst.msk [vmem:[%s208 + $0x80] sm:$0xff] %vm672, %v624
      %690 = vst.msk [vmem:[%s208 + $0x88] sm:$0xff] %vm672, %v625
      %691 = vst.msk [vmem:[%s208 + $0x90] sm:$0xff] %vm672, %v626
      %692 = vst.msk [vmem:[%s208 + $0x98] sm:$0xff] %vm672, %v627
      %693 = vst.msk [vmem:[%s208 + $0xa0] sm:$0xff] %vm672, %v628
      %694 = vst.msk [vmem:[%s208 + $0xa8] sm:$0xff] %vm672, %v629
      %695 = vst.msk [vmem:[%s208 + $0xb0] sm:$0xff] %vm672, %v630
      %696 = vst.msk [vmem:[%s208 + $0xb8] sm:$0xff] %vm672, %v631
      %697 = vst.msk [vmem:[%s208 + $0xc0] sm:$0xff] %vm672, %v632
      %698 = vst.msk [vmem:[%s208 + $0xc8] sm:$0xff] %vm672, %v633
      %699 = vst.msk [vmem:[%s208 + $0xd0] sm:$0xff] %vm672, %v634
      %700 = vst.msk [vmem:[%s208 + $0xd8] sm:$0xff] %vm672, %v635
      %701 = vst.msk [vmem:[%s208 + $0xe0] sm:$0xff] %vm672, %v636
      %702 = vst.msk [vmem:[%s208 + $0xe8] sm:$0xff] %vm672, %v637
      %703 = vst.msk [vmem:[%s208 + $0xf0] sm:$0xff] %vm672, %v638
      %704 = vst.msk [vmem:[%s208 + $0xf8] sm:$0xff] %vm672, %v639
      %705 = vst.msk [vmem:[%s208 + $0x100] sm:$0xff] %vm672, %v640
      %706 = vst.msk [vmem:[%s208 + $0x108] sm:$0xff] %vm672, %v641
      %707 = vst.msk [vmem:[%s208 + $0x110] sm:$0xff] %vm672, %v642
      %708 = vst.msk [vmem:[%s208 + $0x118] sm:$0xff] %vm672, %v643
      %709 = vst.msk [vmem:[%s208 + $0x120] sm:$0xff] %vm672, %v644
      %710 = vst.msk [vmem:[%s208 + $0x128] sm:$0xff] %vm672, %v645
      %711 = vst.msk [vmem:[%s208 + $0x130] sm:$0xff] %vm672, %v646
      %712 = vst.msk [vmem:[%s208 + $0x138] sm:$0xff] %vm672, %v647
      %713 = vst.msk [vmem:[%s208 + $0x140] sm:$0xff] %vm672, %v648
      %714 = vst.msk [vmem:[%s208 + $0x148] sm:$0xff] %vm672, %v649
      %715 = vst.msk [vmem:[%s208 + $0x150] sm:$0xff] %vm672, %v650
      %716 = vst.msk [vmem:[%s208 + $0x158] sm:$0xff] %vm672, %v651
      %717 = vst.msk [vmem:[%s208 + $0x160] sm:$0xff] %vm672, %v652
      %718 = vst.msk [vmem:[%s208 + $0x168] sm:$0xff] %vm672, %v653
      %719 = vst.msk [vmem:[%s208 + $0x170] sm:$0xff] %vm672, %v654
      %720 = vst.msk [vmem:[%s208 + $0x178] sm:$0xff] %vm672, %v655
      %721 = vst.msk [vmem:[%s208 + $0x180] sm:$0xff] %vm672, %v656
      %722 = vst.msk [vmem:[%s208 + $0x188] sm:$0xff] %vm672, %v657
      %723 = vst.msk [vmem:[%s208 + $0x190] sm:$0xff] %vm672, %v658
      %724 = vst.msk [vmem:[%s208 + $0x198] sm:$0xff] %vm672, %v659
      %725 = vst.msk [vmem:[%s208 + $0x1a0] sm:$0xff] %vm672, %v660
      %726 = vst.msk [vmem:[%s208 + $0x1a8] sm:$0xff] %vm672, %v661
      %727 = vst.msk [vmem:[%s208 + $0x1b0] sm:$0xff] %vm672, %v662
      %728 = vst.msk [vmem:[%s208 + $0x1b8] sm:$0xff] %vm672, %v663
      %729 = vst.msk [vmem:[%s208 + $0x1c0] sm:$0xff] %vm672, %v664
      %730 = vst.msk [vmem:[%s208 + $0x1c8] sm:$0xff] %vm672, %v665
      %731 = vst.msk [vmem:[%s208 + $0x1d0] sm:$0xff] %vm672, %v666
      %732 = vst.msk [vmem:[%s208 + $0x1d8] sm:$0xff] %vm672, %v667
      %733 = vst.msk [vmem:[%s208 + $0x1e0] sm:$0xff] %vm672, %v668
      %734 = vst.msk [vmem:[%s208 + $0x1e8] sm:$0xff] %vm672, %v669
      %735 = vst.msk [vmem:[%s208 + $0x1f0] sm:$0xff] %vm672, %v670
      %736 = vst.msk [vmem:[%s208 + $0x1f8] sm:$0xff] %vm672, %v671
      %s737 = smul.u32 64, %s19
      %p738 = scmp.lt.s32.totalorder %s18, 1
      %s739 = scalar_select %p738, %s18, 1
      %p740 = scmp.lt.s32.totalorder %s737, 127
      %s741 = scalar_select %p740, %s737, 127
      %s742 = smul.addr %s739, 128
      %s743 = sadd.s32 %s741, %s742
      %s744 = smul.addr %s743, 8
      %s745 = scalar_lea.vmem %s3, %s744
      // Predicated region
      $region33: #{upsample_forward.3} parent=31 // pred_check
        %p746 = pneg %p116
      $region34: #{upsample_forward.3} parent=31 // pred_check_branch
        %748 = sbr.rel (%p746) target = $region36
      $region35: #{upsample_forward.3} parent=31 // pred_region
        %s749 = smul.u32 64, %s19
      $region36: #{upsample_forward.3} parent=31 // pred_fallthru
        _
    $region32: #{upsample_forward.3} parent=5 // pred_fallthru
      _
    %p750 = scmp.le.s32.totalorder 2, %s9
    // Predicated region
    $region37: #{upsample_forward.3} parent=5 // pred_check
      %p751 = pneg %p750
    $region38: #{upsample_forward.3} parent=5 // pred_check_branch
      %753 = sbr.rel (%p751) target = $region40
    $region39: #{upsample_forward.3} parent=5 // pred_region
      %s754 = ssub.s32 %s9, 2
      // Predicated region
      $region41: #{upsample_forward.3} parent=39 // pred_check
        %p755 = pneg %p122
      $region42: #{upsample_forward.3} parent=39 // pred_check_branch
        %757 = sbr.rel (%p755) target = $region44
      $region43: #{upsample_forward.3} parent=39 // pred_region
        %s758 = smul.u32 64, %s21
        %p759 = scmp.lt.s32.totalorder %s20, 1
        %s760 = scalar_select %p759, %s20, 1
        %p761 = scmp.lt.s32.totalorder %s758, 127
        %s762 = scalar_select %p761, %s758, 127
        %s763 = smul.addr %s760, 128
        %s764 = sadd.s32 %s762, %s763
        %s765 = smul.addr %s764, 8
        %s766 = scalar_lea.vmem %s3, %s765
      $region44: #{upsample_forward.3} parent=39 // pred_fallthru
        _
    $region40: #{upsample_forward.3} parent=5 // pred_fallthru
      _
  $region6: #{upsample_forward.3} parent=0 // loop_footer
    %s13 = sadd.s32 1, %s9
  $region7: #{upsample_forward.3} parent=0 // loop_footer_branch
    %8 = sbr.rel target = $region3
  $region8: #{upsample_forward.3} parent=0 // loop_exit
    _

// kernel: upsample_forward.2
$region0: #{upsample_forward.2}
  #allocation0 [shape = 'u32[]', space=smem, size = 0x4, offset = 0x4, fixed_abs, tag = 'smem constant byte address 0x4 - core index']
  #allocation1 [shape = 'u32[144,128]{1,0:T(1,128)}', space=vmem, size = 0x12000, scoped, tag = 'internal scratch']
  %s0 = inlined_call_operand.vmem [shape: bf16[2,1024,36], index: 0, kind: input, shape index: {}]
  %s1 = inlined_call_operand.vmem [shape: bf16[36,128], index: 1, kind: input, shape index: {}]
  %s2 = inlined_call_operand.vmem [shape: f32[1,128], index: 2, kind: input, shape index: {}]
  %s3 = inlined_call_operand.vmem [shape: bf16[2,1024,8], index: 3, kind: output, shape index: {0}]
  %s4 = inlined_call_operand.vmem [shape: f32[2,2,2,128], index: 4, kind: output, shape index: {1}]
  %5 = xla_tuple %s3, %s4
  %s6 = sld [smem:[#allocation0]]
  $region53: #{upsample_forward.2} parent=0
    _
  %s8 = ssub.s32 1, %s6
  %s9 = scalar_select 0, %s8, %s6
  loop: start=0, step=1, limit=6
  $region2: #{upsample_forward.2} parent=0 // loop_pre_header
    _
  $region3: #{upsample_forward.2} parent=0 // loop_header
    %s11 = sphi 0, %s15
    %p12 = scmp.ge.s32.totalorder %s11, 6
    %s18 = sphi 0, %s30
    %s19 = sphi 0, %s26
    %s20 = sphi 0, %s18
    %s21 = sphi 0, %s19
    %s22 = sphi 0, %s20
    %s23 = sphi 0, %s21
    %s35 = sphi 0, %s37
    %s38 = sphi 0, %s35
    %s39 = sphi 0, %s38
    %s55 = sphi 0, %s39
    %s59 = sphi 0, %s59
    %s61 = sphi 0, %s59
    %s62 = sphi 0, %s61
    %s76 = sphi 0, %s62
    %s80 = sphi 0, %s80
    %s82 = sphi 0, %s80
    %s83 = sphi 0, %s82
    %s97 = sphi 0, %s83
    %s105 = sphi 0, %s107
    %s108 = sphi 0, %s105
    %s109 = sphi 0, %s108
    %s125 = sphi 0, %s109
    %s133 = sphi 0, %s135
    %s136 = sphi 0, %s133
    %s137 = sphi 0, %s136
    %s153 = sphi 0, %s137
  $region4: #{upsample_forward.2} parent=0 // loop_header_branch
    %14 = sbr.rel (%p12) target = $region8
  $region5: #{upsample_forward.2} parent=0 // loop_body
    %s16 = ssub.s32 %s11, 1
    %s17 = ssub.s32 %s11, 2
    %s24 = sadd.s32 1, %s19
    %p25 = scmp.ge.s32.totalorder %s24, 2
    %s26 = scalar_select %p25, 0, %s24
    %s27 = sadd.s32 1, %s18
    %s28 = scalar_select %p25, %s27, %s18
    %p29 = scmp.ge.s32.totalorder %s28, 2
    %s30 = scalar_select %p29, 0, %s28
    %s31 = ssub.s32 %s18, %s30
    %s32 = ssub.s32 %s19, %s26
    %s33 = sor.u32 %s31, %s32
    %p34 = scmp.eq.s32.totalorder %s33, 0
    %s36 = sadd.s32 %s35, 1
    %s37 = scalar_select %p34, %s35, %s36
    %p40 = pneg %p34
    %p41 = scmp.eq.s32.totalorder %s11, 3
    %p42 = por %p40, %p41
    %p43 = scmp.ne.s32.totalorder %s35, %s38
    %p44 = scmp.eq.s32.totalorder %s11, 0
    %p45 = por %p43, %p44
    %p46 = scmp.ne.s32.totalorder %s35, %s38
    %p47 = scmp.eq.s32.totalorder %s16, 3
    %p48 = por %p46, %p47
    %p49 = scmp.ne.s32.totalorder %s38, %s39
    %p50 = scmp.eq.s32.totalorder %s16, 0
    %p51 = por %p49, %p50
    %p52 = scmp.ne.s32.totalorder %s38, %s39
    %p53 = scmp.eq.s32.totalorder %s17, 3
    %p54 = por %p52, %p53
    %p56 = scmp.ne.s32.totalorder %s39, %s55
    %p57 = scmp.eq.s32.totalorder %s17, 0
    %p58 = por %p56, %p57
    %s60 = sadd.s32 %s59, 1
    %p63 = scmp.eq.s32.totalorder %s11, 3
    %p64 = scmp.ne.s32.totalorder %s59, %s61
    %p65 = scmp.eq.s32.totalorder %s11, 0
    %p66 = por %p64, %p65
    %p67 = scmp.ne.s32.totalorder %s59, %s61
    %p68 = scmp.eq.s32.totalorder %s16, 3
    %p69 = por %p67, %p68
    %p70 = scmp.ne.s32.totalorder %s61, %s62
    %p71 = scmp.eq.s32.totalorder %s16, 0
    %p72 = por %p70, %p71
    %p73 = scmp.ne.s32.totalorder %s61, %s62
    %p74 = scmp.eq.s32.totalorder %s17, 3
    %p75 = por %p73, %p74
    %p77 = scmp.ne.s32.totalorder %s62, %s76
    %p78 = scmp.eq.s32.totalorder %s17, 0
    %p79 = por %p77, %p78
    %s81 = sadd.s32 %s80, 1
    %p84 = scmp.eq.s32.totalorder %s11, 3
    %p85 = scmp.ne.s32.totalorder %s80, %s82
    %p86 = scmp.eq.s32.totalorder %s11, 0
    %p87 = por %p85, %p86
    %p88 = scmp.ne.s32.totalorder %s80, %s82
    %p89 = scmp.eq.s32.totalorder %s16, 3
    %p90 = por %p88, %p89
    %p91 = scmp.ne.s32.totalorder %s82, %s83
    %p92 = scmp.eq.s32.totalorder %s16, 0
    %p93 = por %p91, %p92
    %p94 = scmp.ne.s32.totalorder %s82, %s83
    %p95 = scmp.eq.s32.totalorder %s17, 3
    %p96 = por %p94, %p95
    %p98 = scmp.ne.s32.totalorder %s83, %s97
    %p99 = scmp.eq.s32.totalorder %s17, 0
    %p100 = por %p98, %p99
    %s101 = ssub.s32 %s18, %s30
    %s102 = ssub.s32 %s19, %s26
    %s103 = sor.u32 %s101, %s102
    %p104 = scmp.eq.s32.totalorder %s103, 0
    %s106 = sadd.s32 %s105, 1
    %s107 = scalar_select %p104, %s105, %s106
    %p110 = pneg %p104
    %p111 = scmp.eq.s32.totalorder %s11, 3
    %p112 = por %p110, %p111
    %p113 = scmp.ne.s32.totalorder %s105, %s108
    %p114 = scmp.eq.s32.totalorder %s11, 0
    %p115 = por %p113, %p114
    %p116 = scmp.ne.s32.totalorder %s105, %s108
    %p117 = scmp.eq.s32.totalorder %s16, 3
    %p118 = por %p116, %p117
    %p119 = scmp.ne.s32.totalorder %s108, %s109
    %p120 = scmp.eq.s32.totalorder %s16, 0
    %p121 = por %p119, %p120
    %p122 = scmp.ne.s32.totalorder %s108, %s109
    %p123 = scmp.eq.s32.totalorder %s17, 3
    %p124 = por %p122, %p123
    %p126 = scmp.ne.s32.totalorder %s109, %s125
    %p127 = scmp.eq.s32.totalorder %s17, 0
    %p128 = por %p126, %p127
    %s129 = ssub.s32 %s18, %s30
    %s130 = ssub.s32 %s19, %s26
    %s131 = sor.u32 %s129, %s130
    %p132 = scmp.eq.s32.totalorder %s131, 0
    %s134 = sadd.s32 %s133, 1
    %s135 = scalar_select %p132, %s133, %s134
    %p138 = pneg %p132
    %p139 = scmp.eq.s32.totalorder %s11, 3
    %p140 = por %p138, %p139
    %p141 = scmp.ne.s32.totalorder %s133, %s136
    %p142 = scmp.eq.s32.totalorder %s11, 0
    %p143 = por %p141, %p142
    %p144 = scmp.ne.s32.totalorder %s133, %s136
    %p145 = scmp.eq.s32.totalorder %s16, 3
    %p146 = por %p144, %p145
    %p147 = scmp.ne.s32.totalorder %s136, %s137
    %p148 = scmp.eq.s32.totalorder %s16, 0
    %p149 = por %p147, %p148
    %p150 = scmp.ne.s32.totalorder %s136, %s137
    %p151 = scmp.eq.s32.totalorder %s17, 3
    %p152 = por %p150, %p151
    %p154 = scmp.ne.s32.totalorder %s137, %s153
    %p155 = scmp.eq.s32.totalorder %s17, 0
    %p156 = por %p154, %p155
    %p157 = scmp.le.s32.totalorder 1, %s11
    %p158 = scmp.lt.s32.totalorder %s11, 5
    %p159 = pnand %p157, %p158
    %p160 = pneg %p159
    // Predicated region
    $region9: #{upsample_forward.2} parent=5 // pred_check
      _
    $region10: #{upsample_forward.2} parent=5 // pred_check_branch
      %162 = sbr.rel (%p159) target = $region12
    $region11: #{upsample_forward.2} parent=5 // pred_region
      %s163 = ssub.s32 %s11, 1
      // Predicated region
      $region13: #{upsample_forward.2} parent=11 // pred_check
        %p164 = pneg %p72
      $region14: #{upsample_forward.2} parent=11 // pred_check_branch
        %166 = sbr.rel (%p164) target = $region16
      $region15: #{upsample_forward.2} parent=11 // pred_region
        _
      $region16: #{upsample_forward.2} parent=11 // pred_fallthru
        _
      // Predicated region
      $region17: #{upsample_forward.2} parent=11 // pred_check
        %p167 = pneg %p93
      $region18: #{upsample_forward.2} parent=11 // pred_check_branch
        %169 = sbr.rel (%p167) target = $region20
      $region19: #{upsample_forward.2} parent=11 // pred_region
        _
      $region20: #{upsample_forward.2} parent=11 // pred_fallthru
        _
    $region12: #{upsample_forward.2} parent=5 // pred_fallthru
      _
    %p170 = scmp.lt.s32.totalorder %s11, 4
    // Predicated region
    $region21: #{upsample_forward.2} parent=5 // pred_check
      %p171 = pneg %p170
    $region22: #{upsample_forward.2} parent=5 // pred_check_branch
      %173 = sbr.rel (%p171) target = $region24
    $region23: #{upsample_forward.2} parent=5 // pred_region
      // Predicated region
      $region25: #{upsample_forward.2} parent=23 // pred_check
        %p174 = pneg %p45
      $region26: #{upsample_forward.2} parent=23 // pred_check_branch
        %176 = sbr.rel (%p174) target = $region28
      $region27: #{upsample_forward.2} parent=23 // pred_region
        %s177 = smul.u32 64, %s19
        %p178 = scmp.lt.s32.totalorder %s18, 1
        %s179 = scalar_select %p178, %s18, 1
        %p180 = scmp.lt.s32.totalorder %s177, 127
        %s181 = scalar_select %p180, %s177, 127
        %s182 = smul.addr %s179, 128
        %s183 = sadd.s32 %s181, %s182
        %s184 = smul.addr %s183, 4
        %s185 = scalar_lea.vmem %s0, %s184
        %s186 = smul.u32 64, %s19
      $region28: #{upsample_forward.2} parent=23 // pred_fallthru
        _
    $region24: #{upsample_forward.2} parent=5 // pred_fallthru
      _
    %p187 = scmp.le.s32.totalorder 1, %s11
    %p188 = scmp.lt.s32.totalorder %s11, 5
    %p189 = pnand %p187, %p188
    %p190 = pneg %p189
    // Predicated region
    $region29: #{upsample_forward.2} parent=5 // pred_check
      _
    $region30: #{upsample_forward.2} parent=5 // pred_check_branch
      %192 = sbr.rel (%p189) target = $region32
    $region31: #{upsample_forward.2} parent=5 // pred_region
      %s193 = ssub.s32 %s11, 1
      %s194 = smul.u32 64, %s21
      %p195 = scmp.lt.s32.totalorder %s20, 1
      %s196 = scalar_select %p195, %s20, 1
      %p197 = scmp.lt.s32.totalorder %s194, 127
      %s198 = scalar_select %p197, %s194, 127
      %s199 = smul.addr %s196, 128
      %s200 = sadd.s32 %s198, %s199
      %s201 = smul.addr %s200, 4
      %s202 = scalar_lea.vmem %s0, %s201
      %p203 = pneg %p51
      %p204 = pneg %p48
      %p205 = pneg %p72
      %p206 = pneg %p69
      %p207 = pneg %p93
      %p208 = pneg %p90
      %p209 = pneg %p121
      %p210 = pneg %p118
      %s211 = smul.u32 64, %s21
      %p212 = scmp.lt.s32.totalorder %s20, 1
      %s213 = scalar_select %p212, %s20, 1
      %p214 = scmp.lt.s32.totalorder %s211, 127
      %s215 = scalar_select %p214, %s211, 127
      %s216 = smul.addr %s213, 128
      %s217 = sadd.s32 %s215, %s216
      %s218 = smul.addr %s217, 4
      %s219 = scalar_lea.vmem %s3, %s218
      %p220 = pneg %p149
      %p221 = pneg %p146
      %p222 = scmp.lt.s32.totalorder %s20, 1
      %s223 = scalar_select %p222, %s20, 1
      %p224 = scmp.lt.s32.totalorder %s21, 1
      %s225 = scalar_select %p224, %s21, 1
      %s226 = smul.addr %s223, 2
      %s227 = sadd.s32 %s225, %s226
      %s228 = smul.addr %s227, 2
      %s229 = scalar_lea.vmem %s4, %s228
      %s230 = smul.u32 64, %s21
      %p231 = scmp.lt.s32.totalorder %s20, 1
      %s232 = scalar_select %p231, %s20, 1
      %p233 = scmp.lt.s32.totalorder %s230, 127
      %s234 = scalar_select %p233, %s230, 127
      %s235 = smul.addr %s232, 128
      %s236 = sadd.s32 %s234, %s235
      %s237 = smul.addr %s236, 4
      %s238 = scalar_lea.vmem %s0, %s237
      %s239 = smul.u32 64, %s21
      %s240 = smul.u32 64, %s21
      %p241 = scmp.lt.s32.totalorder %s20, 1
      %s242 = scalar_select %p241, %s20, 1
      %p243 = scmp.lt.s32.totalorder %s240, 127
      %s244 = scalar_select %p243, %s240, 127
      %s245 = smul.addr %s242, 128
      %s246 = sadd.s32 %s244, %s245
      %s247 = smul.addr %s246, 4
      %s248 = scalar_lea.vmem %s3, %s247
      %s249 = smul.u32 64, %s21
      %p250 = scmp.lt.s32.totalorder %s20, 1
      %s251 = scalar_select %p250, %s20, 1
      %p252 = scmp.lt.s32.totalorder %s21, 1
      %s253 = scalar_select %p252, %s21, 1
      %s254 = smul.addr %s251, 2
      %s255 = sadd.s32 %s253, %s254
      %s256 = smul.addr %s255, 2
      %s257 = scalar_lea.vmem %s4, %s256
      %v259 = vld [vmem:[%s238] sm:$0xf]
      %v260 = vld [vmem:[%s238 + $0x4] sm:$0xf]
      %v261 = vld [vmem:[%s238 + $0x8] sm:$0xf]
      %v262 = vld [vmem:[%s238 + $0xc] sm:$0xf]
      %v263 = vld [vmem:[%s238 + $0x10] sm:$0xf]
      %v264 = vld [vmem:[%s238 + $0x14] sm:$0xf]
      %v265 = vld [vmem:[%s238 + $0x18] sm:$0xf]
      %v266 = vld [vmem:[%s238 + $0x1c] sm:$0xf]
      %v267 = vld [vmem:[%s238 + $0x20] sm:$0xf]
      %v268 = vld [vmem:[%s238 + $0x24] sm:$0xf]
      %v269 = vld [vmem:[%s238 + $0x28] sm:$0xf]
      %v270 = vld [vmem:[%s238 + $0x2c] sm:$0xf]
      %v271 = vld [vmem:[%s238 + $0x30] sm:$0xf]
      %v272 = vld [vmem:[%s238 + $0x34] sm:$0xf]
      %v273 = vld [vmem:[%s238 + $0x38] sm:$0xf]
      %v274 = vld [vmem:[%s238 + $0x3c] sm:$0xf]
      %v275 = vld [vmem:[%s238 + $0x40] sm:$0xf]
      %v276 = vld [vmem:[%s238 + $0x44] sm:$0xf]
      %v277 = vld [vmem:[%s238 + $0x48] sm:$0xf]
      %v278 = vld [vmem:[%s238 + $0x4c] sm:$0xf]
      %v279 = vld [vmem:[%s238 + $0x50] sm:$0xf]
      %v280 = vld [vmem:[%s238 + $0x54] sm:$0xf]
      %v281 = vld [vmem:[%s238 + $0x58] sm:$0xf]
      %v282 = vld [vmem:[%s238 + $0x5c] sm:$0xf]
      %v283 = vld [vmem:[%s238 + $0x60] sm:$0xf]
      %v284 = vld [vmem:[%s238 + $0x64] sm:$0xf]
      %v285 = vld [vmem:[%s238 + $0x68] sm:$0xf]
      %v286 = vld [vmem:[%s238 + $0x6c] sm:$0xf]
      %v287 = vld [vmem:[%s238 + $0x70] sm:$0xf]
      %v288 = vld [vmem:[%s238 + $0x74] sm:$0xf]
      %v289 = vld [vmem:[%s238 + $0x78] sm:$0xf]
      %v290 = vld [vmem:[%s238 + $0x7c] sm:$0xf]
      %v291 = vld [vmem:[%s238 + $0x80] sm:$0xf]
      %v292 = vld [vmem:[%s238 + $0x84] sm:$0xf]
      %v293 = vld [vmem:[%s238 + $0x88] sm:$0xf]
      %v294 = vld [vmem:[%s238 + $0x8c] sm:$0xf]
      %v295 = vld [vmem:[%s238 + $0x90] sm:$0xf]
      %v296 = vld [vmem:[%s238 + $0x94] sm:$0xf]
      %v297 = vld [vmem:[%s238 + $0x98] sm:$0xf]
      %v298 = vld [vmem:[%s238 + $0x9c] sm:$0xf]
      %v299 = vld [vmem:[%s238 + $0xa0] sm:$0xf]
      %v300 = vld [vmem:[%s238 + $0xa4] sm:$0xf]
      %v301 = vld [vmem:[%s238 + $0xa8] sm:$0xf]
      %v302 = vld [vmem:[%s238 + $0xac] sm:$0xf]
      %v303 = vld [vmem:[%s238 + $0xb0] sm:$0xf]
      %v304 = vld [vmem:[%s238 + $0xb4] sm:$0xf]
      %v305 = vld [vmem:[%s238 + $0xb8] sm:$0xf]
      %v306 = vld [vmem:[%s238 + $0xbc] sm:$0xf]
      %v307 = vld [vmem:[%s238 + $0xc0] sm:$0xf]
      %v308 = vld [vmem:[%s238 + $0xc4] sm:$0xf]
      %v309 = vld [vmem:[%s238 + $0xc8] sm:$0xf]
      %v310 = vld [vmem:[%s238 + $0xcc] sm:$0xf]
      %v311 = vld [vmem:[%s238 + $0xd0] sm:$0xf]
      %v312 = vld [vmem:[%s238 + $0xd4] sm:$0xf]
      %v313 = vld [vmem:[%s238 + $0xd8] sm:$0xf]
      %v314 = vld [vmem:[%s238 + $0xdc] sm:$0xf]
      %v315 = vld [vmem:[%s238 + $0xe0] sm:$0xf]
      %v316 = vld [vmem:[%s238 + $0xe4] sm:$0xf]
      %v317 = vld [vmem:[%s238 + $0xe8] sm:$0xf]
      %v318 = vld [vmem:[%s238 + $0xec] sm:$0xf]
      %v319 = vld [vmem:[%s238 + $0xf0] sm:$0xf]
      %v320 = vld [vmem:[%s238 + $0xf4] sm:$0xf]
      %v321 = vld [vmem:[%s238 + $0xf8] sm:$0xf]
      %v322 = vld [vmem:[%s238 + $0xfc] sm:$0xf]
      %v323 = vld [vmem:[%s1] sm:$0xf]
      %v324 = vld [vmem:[%s1 + $0x4] sm:$0xf]
      %v325 = vld [vmem:[%s1 + $0x8] sm:$0xf]
      %v326 = vld [vmem:[%s1 + $0xc] sm:$0xf]
      %v327 = vld [vmem:[%s1 + $0x10] sm:$0x3]
      %v328 = vld [vmem:[%s2] sm:$0x1]
      %v330 = vlaneseq
      %v331 = vshrl.u32 %v330, 7
      %v332 = vsub.s32 0, %v331
      %v333 = vrot.slane %v328, %v332
      %v399 = vunpack.c.l.b16 %v259
      %v400 = vunpack.c.l.b16 %v260
      %v401 = vunpack.c.l.b16 %v261
      %v402 = vunpack.c.l.b16 %v262
      %v403 = vunpack.c.l.b16 %v263
      %v404 = vunpack.c.l.b16 %v264
      %v405 = vunpack.c.l.b16 %v265
      %v406 = vunpack.c.l.b16 %v266
      %v407 = vunpack.c.l.b16 %v267
      %v408 = vunpack.c.l.b16 %v268
      %v409 = vunpack.c.l.b16 %v269
      %v410 = vunpack.c.l.b16 %v270
      %v411 = vunpack.c.l.b16 %v271
      %v412 = vunpack.c.l.b16 %v272
      %v413 = vunpack.c.l.b16 %v273
      %v414 = vunpack.c.l.b16 %v274
      %v415 = vunpack.c.l.b16 %v275
      %v416 = vunpack.c.l.b16 %v276
      %v417 = vunpack.c.l.b16 %v277
      %v418 = vunpack.c.l.b16 %v278
      %v419 = vunpack.c.l.b16 %v279
      %v420 = vunpack.c.l.b16 %v280
      %v421 = vunpack.c.l.b16 %v281
      %v422 = vunpack.c.l.b16 %v282
      %v423 = vunpack.c.l.b16 %v283
      %v424 = vunpack.c.l.b16 %v284
      %v425 = vunpack.c.l.b16 %v285
      %v426 = vunpack.c.l.b16 %v286
      %v427 = vunpack.c.l.b16 %v287
      %v428 = vunpack.c.l.b16 %v288
      %v429 = vunpack.c.l.b16 %v289
      %v430 = vunpack.c.l.b16 %v290
      %v431 = vunpack.c.l.b16 %v291
      %v432 = vunpack.c.l.b16 %v292
      %v433 = vunpack.c.l.b16 %v293
      %v434 = vunpack.c.l.b16 %v294
      %v435 = vunpack.c.l.b16 %v295
      %v436 = vunpack.c.l.b16 %v296
      %v437 = vunpack.c.l.b16 %v297
      %v438 = vunpack.c.l.b16 %v298
      %v439 = vunpack.c.l.b16 %v299
      %v440 = vunpack.c.l.b16 %v300
      %v441 = vunpack.c.l.b16 %v301
      %v442 = vunpack.c.l.b16 %v302
      %v443 = vunpack.c.l.b16 %v303
      %v444 = vunpack.c.l.b16 %v304
      %v445 = vunpack.c.l.b16 %v305
      %v446 = vunpack.c.l.b16 %v306
      %v447 = vunpack.c.l.b16 %v307
      %v448 = vunpack.c.l.b16 %v308
      %v449 = vunpack.c.l.b16 %v309
      %v450 = vunpack.c.l.b16 %v310
      %v451 = vunpack.c.l.b16 %v311
      %v452 = vunpack.c.l.b16 %v312
      %v453 = vunpack.c.l.b16 %v313
      %v454 = vunpack.c.l.b16 %v314
      %v455 = vunpack.c.l.b16 %v315
      %v456 = vunpack.c.l.b16 %v316
      %v457 = vunpack.c.l.b16 %v317
      %v458 = vunpack.c.l.b16 %v318
      %v459 = vunpack.c.l.b16 %v319
      %v460 = vunpack.c.l.b16 %v320
      %v461 = vunpack.c.l.b16 %v321
      %v462 = vunpack.c.l.b16 %v322
      %v463 = vpack.c.b16 %v400, %v399
      %v464 = vpack.c.b16 %v402, %v401
      %v465 = vpack.c.b16 %v404, %v403
      %v466 = vpack.c.b16 %v406, %v405
      %v467 = vpack.c.b16 %v408, %v407
      %v468 = vpack.c.b16 %v410, %v409
      %v469 = vpack.c.b16 %v412, %v411
      %v470 = vpack.c.b16 %v414, %v413
      %v471 = vpack.c.b16 %v416, %v415
      %v472 = vpack.c.b16 %v418, %v417
      %v473 = vpack.c.b16 %v420, %v419
      %v474 = vpack.c.b16 %v422, %v421
      %v475 = vpack.c.b16 %v424, %v423
      %v476 = vpack.c.b16 %v426, %v425
      %v477 = vpack.c.b16 %v428, %v427
      %v478 = vpack.c.b16 %v430, %v429
      %v479 = vpack.c.b16 %v432, %v431
      %v480 = vpack.c.b16 %v434, %v433
      %v481 = vpack.c.b16 %v436, %v435
      %v482 = vpack.c.b16 %v438, %v437
      %v483 = vpack.c.b16 %v440, %v439
      %v484 = vpack.c.b16 %v442, %v441
      %v485 = vpack.c.b16 %v444, %v443
      %v486 = vpack.c.b16 %v446, %v445
      %v487 = vpack.c.b16 %v448, %v447
      %v488 = vpack.c.b16 %v450, %v449
      %v489 = vpack.c.b16 %v452, %v451
      %v490 = vpack.c.b16 %v454, %v453
      %v491 = vpack.c.b16 %v456, %v455
      %v492 = vpack.c.b16 %v458, %v457
      %v493 = vpack.c.b16 %v460, %v459
      %v494 = vpack.c.b16 %v462, %v461
      %v500 = vunpack.c.l.b16 %v323
      %v501 = vunpack.c.l.b16 %v324
      %v502 = vunpack.c.l.b16 %v325
      %v503 = vunpack.c.l.b16 %v326
      %v504 = vunpack.c.l.b16 %v327
      %v505 = vpack.c.b16 %v501, %v500
      %v506 = vpack.c.b16 %v503, %v502
      %v507 = vpack.c.b16 %v504, %v504
      %vm510 = vcmask 293888
      %v512 = vsel %vm510, %v463, 0
      %v515 = vsel %vm510, %v464, 0
      %v518 = vsel %vm510, %v465, 0
      %v521 = vsel %vm510, %v466, 0
      %v524 = vsel %vm510, %v467, 0
      %v527 = vsel %vm510, %v468, 0
      %v530 = vsel %vm510, %v469, 0
      %v533 = vsel %vm510, %v470, 0
      %v536 = vsel %vm510, %v471, 0
      %v539 = vsel %vm510, %v472, 0
      %v542 = vsel %vm510, %v473, 0
      %v545 = vsel %vm510, %v474, 0
      %v548 = vsel %vm510, %v475, 0
      %v551 = vsel %vm510, %v476, 0
      %v554 = vsel %vm510, %v477, 0
      %v557 = vsel %vm510, %v478, 0
      %v560 = vsel %vm510, %v479, 0
      %v563 = vsel %vm510, %v480, 0
      %v566 = vsel %vm510, %v481, 0
      %v569 = vsel %vm510, %v482, 0
      %v572 = vsel %vm510, %v483, 0
      %v575 = vsel %vm510, %v484, 0
      %v578 = vsel %vm510, %v485, 0
      %v581 = vsel %vm510, %v486, 0
      %v584 = vsel %vm510, %v487, 0
      %v587 = vsel %vm510, %v488, 0
      %v590 = vsel %vm510, %v489, 0
      %v593 = vsel %vm510, %v490, 0
      %v596 = vsel %vm510, %v491, 0
      %v599 = vsel %vm510, %v492, 0
      %v602 = vsel %vm510, %v493, 0
      %v605 = vsel %vm510, %v494, 0
      %vm607 = vcmask 1041408
      %v609 = vsel %vm607, %v507, 0
      %611 = vmatprep.subr.bf16.mxu0 0
      %612 = vmatpush1.bf16.msra.mxu0 %v505
      %613 = vmatprep.subr.bf16.mxu0 0
      %614 = vmatpush1.bf16.msra.mxu0 %v506
      %615 = vmatprep.subr.bf16.mxu0 0
      %616 = vmatpush1.bf16.msra.mxu0 %v609
      %617 = vmatprep.subr.bf16.mxu0 0
      %618 = vmatpush1.bf16.msra.mxu0 0
      %619 = vmatprep.subr.bf16.mxu0 0
      %620 = vmatpush1.bf16.msra.mxu0 0
      %621 = vmatprep.subr.bf16.mxu0 0
      %622 = vmatpush1.bf16.msra.mxu0 0
      %623 = vmatprep.subr.bf16.mxu0 0
      %624 = vmatpush1.bf16.msra.mxu0 0
      %625 = vmatprep.subr.bf16.mxu0 0
      %626 = vmatpush1.bf16.msra.mxu0 0
      %627 = vmatprep.subr.bf16.mxu0 0
      %628 = vmatpush1.bf16.msra.mxu0 0
      %629 = vmatprep.subr.bf16.mxu0 0
      %630 = vmatpush1.bf16.msra.mxu0 0
      %631 = vmatprep.subr.bf16.mxu0 0
      %632 = vmatpush1.bf16.msra.mxu0 0
      %633 = vmatprep.subr.bf16.mxu0 0
      %634 = vmatpush1.bf16.msra.mxu0 0
      %635 = vmatprep.subr.bf16.mxu0 0
      %636 = vmatpush1.bf16.msra.mxu0 0
      %637 = vmatprep.subr.bf16.mxu0 0
      %638 = vmatpush1.bf16.msra.mxu0 0
      %639 = vmatprep.subr.bf16.mxu0 0
      %640 = vmatpush1.bf16.msra.mxu0 0
      %641 = vmatprep.subr.bf16.mxu0 0
      %642 = vmatpush1.bf16.msra.mxu0 0
      %643 = vmatprep.mubr.bf16.mxu0 0
      %644 = vmatmul.mubr.bf16.gmra.mrb[0].mxu0 %v512
      %v645 = vpop.f32.mrb[0].mxu0
      %v646 = vadd.f32 %v333, %v645
      %v647 = vpop.f32.mrb[0].mxu0
      %v648 = vpop.f32.mrb[0].mxu0
      %v649 = vadd.f32 %v333, %v648
      %v650 = vpop.f32.mrb[0].mxu0
      %651 = vmatprep.mubr.bf16.mxu0 0
      %652 = vmatmul.mubr.bf16.gmra.mrb[0].mxu0 %v515
      %v653 = vpop.f32.mrb[0].mxu0
      %v654 = vadd.f32 %v333, %v653
      %v655 = vpop.f32.mrb[0].mxu0
      %v656 = vpop.f32.mrb[0].mxu0
      %v657 = vadd.f32 %v333, %v656
      %v658 = vpop.f32.mrb[0].mxu0
      %659 = vmatprep.mubr.bf16.mxu0 0
      %660 = vmatmul.mubr.bf16.gmra.mrb[0].mxu0 %v518
      %v661 = vpop.f32.mrb[0].mxu0
      %v662 = vadd.f32 %v333, %v661
      %v663 = vpop.f32.mrb[0].mxu0
      %v664 = vpop.f32.mrb[0].mxu0
      %v665 = vadd.f32 %v333, %v664
      %v666 = vpop.f32.mrb[0].mxu0
      %667 = vmatprep.mubr.bf16.mxu0 0
      %668 = vmatmul.mubr.bf16.gmra.mrb[0].mxu0 %v521
      %v669 = vpop.f32.mrb[0].mxu0
      %v670 = vadd.f32 %v333, %v669
      %v671 = vpop.f32.mrb[0].mxu0
      %v672 = vpop.f32.mrb[0].mxu0
      %v673 = vadd.f32 %v333, %v672
      %v674 = vpop.f32.mrb[0].mxu0
      %675 = vmatprep.mubr.bf16.mxu0 0
      %676 = vmatmul.mubr.bf16.gmra.mrb[0].mxu0 %v524
      %v677 = vpop.f32.mrb[0].mxu0
      %v678 = vadd.f32 %v333, %v677
      %v679 = vpop.f32.mrb[0].mxu0
      %v680 = vpop.f32.mrb[0].mxu0
      %v681 = vadd.f32 %v333, %v680
      %v682 = vpop.f32.mrb[0].mxu0
      %683 = vmatprep.mubr.bf16.mxu0 0
      %684 = vmatmul.mubr.bf16.gmra.mrb[0].mxu0 %v527
      %v685 = vpop.f32.mrb[0].mxu0
      %v686 = vadd.f32 %v333, %v685
      %v687 = vpop.f32.mrb[0].mxu0
      %v688 = vpop.f32.mrb[0].mxu0
      %v689 = vadd.f32 %v333, %v688
      %v690 = vpop.f32.mrb[0].mxu0
      %691 = vmatprep.mubr.bf16.mxu0 0
      %692 = vmatmul.mubr.bf16.gmra.mrb[0].mxu0 %v530
      %v693 = vpop.f32.mrb[0].mxu0
      %v694 = vadd.f32 %v333, %v693
      %v695 = vpop.f32.mrb[0].mxu0
      %v696 = vpop.f32.mrb[0].mxu0
      %v697 = vadd.f32 %v333, %v696
      %v698 = vpop.f32.mrb[0].mxu0
      %699 = vmatprep.mubr.bf16.mxu0 0
      %700 = vmatmul.mubr.bf16.gmra.mrb[0].mxu0 %v533
      %v701 = vpop.f32.mrb[0].mxu0
      %v702 = vadd.f32 %v333, %v701
      %v703 = vpop.f32.mrb[0].mxu0
      %v704 = vpop.f32.mrb[0].mxu0
      %v705 = vadd.f32 %v333, %v704
      %v706 = vpop.f32.mrb[0].mxu0
      %707 = vmatprep.mubr.bf16.mxu0 0
      %708 = vmatmul.mubr.bf16.gmra.mrb[0].mxu0 %v536
      %v709 = vpop.f32.mrb[0].mxu0
      %v710 = vadd.f32 %v333, %v709
      %v711 = vpop.f32.mrb[0].mxu0
      %v712 = vpop.f32.mrb[0].mxu0
      %v713 = vadd.f32 %v333, %v712
      %v714 = vpop.f32.mrb[0].mxu0
      %715 = vmatprep.mubr.bf16.mxu0 0
      %716 = vmatmul.mubr.bf16.gmra.mrb[0].mxu0 %v539
      %v717 = vpop.f32.mrb[0].mxu0
      %v718 = vadd.f32 %v333, %v717
      %v719 = vpop.f32.mrb[0].mxu0
      %v720 = vpop.f32.mrb[0].mxu0
      %v721 = vadd.f32 %v333, %v720
      %v722 = vpop.f32.mrb[0].mxu0
      %723 = vmatprep.mubr.bf16.mxu0 0
      %724 = vmatmul.mubr.bf16.gmra.mrb[0].mxu0 %v542
      %v725 = vpop.f32.mrb[0].mxu0
      %v726 = vadd.f32 %v333, %v725
      %v727 = vpop.f32.mrb[0].mxu0
      %v728 = vpop.f32.mrb[0].mxu0
      %v729 = vadd.f32 %v333, %v728
      %v730 = vpop.f32.mrb[0].mxu0
      %731 = vmatprep.mubr.bf16.mxu0 0
      %732 = vmatmul.mubr.bf16.gmra.mrb[0].mxu0 %v545
      %v733 = vpop.f32.mrb[0].mxu0
      %v734 = vadd.f32 %v333, %v733
      %v735 = vpop.f32.mrb[0].mxu0
      %v736 = vpop.f32.mrb[0].mxu0
      %v737 = vadd.f32 %v333, %v736
      %v738 = vpop.f32.mrb[0].mxu0
      %739 = vmatprep.mubr.bf16.mxu0 0
      %740 = vmatmul.mubr.bf16.gmra.mrb[0].mxu0 %v548
      %v741 = vpop.f32.mrb[0].mxu0
      %v742 = vadd.f32 %v333, %v741
      %v743 = vpop.f32.mrb[0].mxu0
      %v744 = vpop.f32.mrb[0].mxu0
      %v745 = vadd.f32 %v333, %v744
      %v746 = vpop.f32.mrb[0].mxu0
      %747 = vmatprep.mubr.bf16.mxu0 0
      %748 = vmatmul.mubr.bf16.gmra.mrb[0].mxu0 %v551
      %v749 = vpop.f32.mrb[0].mxu0
      %v750 = vadd.f32 %v333, %v749
      %v751 = vpop.f32.mrb[0].mxu0
      %v752 = vpop.f32.mrb[0].mxu0
      %v753 = vadd.f32 %v333, %v752
      %v754 = vpop.f32.mrb[0].mxu0
      %755 = vmatprep.mubr.bf16.mxu0 0
      %756 = vmatmul.mubr.bf16.gmra.mrb[0].mxu0 %v554
      %v757 = vpop.f32.mrb[0].mxu0
      %v758 = vadd.f32 %v333, %v757
      %v759 = vpop.f32.mrb[0].mxu0
      %v760 = vpop.f32.mrb[0].mxu0
      %v761 = vadd.f32 %v333, %v760
      %v762 = vpop.f32.mrb[0].mxu0
      %763 = vmatprep.mubr.bf16.mxu0 0
      %764 = vmatmul.mubr.bf16.gmra.mrb[0].mxu0 %v557
      %v765 = vpop.f32.mrb[0].mxu0
      %v766 = vadd.f32 %v333, %v765
      %v767 = vpop.f32.mrb[0].mxu0
      %v768 = vpop.f32.mrb[0].mxu0
      %v769 = vadd.f32 %v333, %v768
      %v770 = vpop.f32.mrb[0].mxu0
      %771 = vmatprep.mubr.bf16.mxu0 0
      %772 = vmatmul.mubr.bf16.gmra.mrb[0].mxu0 %v560
      %v773 = vpop.f32.mrb[0].mxu0
      %v774 = vadd.f32 %v333, %v773
      %v775 = vpop.f32.mrb[0].mxu0
      %v776 = vpop.f32.mrb[0].mxu0
      %v777 = vadd.f32 %v333, %v776
      %v778 = vpop.f32.mrb[0].mxu0
      %779 = vmatprep.mubr.bf16.mxu0 0
      %780 = vmatmul.mubr.bf16.gmra.mrb[0].mxu0 %v563
      %v781 = vpop.f32.mrb[0].mxu0
      %v782 = vadd.f32 %v333, %v781
      %v783 = vpop.f32.mrb[0].mxu0
      %v784 = vpop.f32.mrb[0].mxu0
      %v785 = vadd.f32 %v333, %v784
      %v786 = vpop.f32.mrb[0].mxu0
      %787 = vmatprep.mubr.bf16.mxu0 0
      %788 = vmatmul.mubr.bf16.gmra.mrb[0].mxu0 %v566
      %v789 = vpop.f32.mrb[0].mxu0
      %v790 = vadd.f32 %v333, %v789
      %v791 = vpop.f32.mrb[0].mxu0
      %v792 = vpop.f32.mrb[0].mxu0
      %v793 = vadd.f32 %v333, %v792
      %v794 = vpop.f32.mrb[0].mxu0
      %795 = vmatprep.mubr.bf16.mxu0 0
      %796 = vmatmul.mubr.bf16.gmra.mrb[0].mxu0 %v569
      %v797 = vpop.f32.mrb[0].mxu0
      %v798 = vadd.f32 %v333, %v797
      %v799 = vpop.f32.mrb[0].mxu0
      %v800 = vpop.f32.mrb[0].mxu0
      %v801 = vadd.f32 %v333, %v800
      %v802 = vpop.f32.mrb[0].mxu0
      %803 = vmatprep.mubr.bf16.mxu0 0
      %804 = vmatmul.mubr.bf16.gmra.mrb[0].mxu0 %v572
      %v805 = vpop.f32.mrb[0].mxu0
      %v806 = vadd.f32 %v333, %v805
      %v807 = vpop.f32.mrb[0].mxu0
      %v808 = vpop.f32.mrb[0].mxu0
      %v809 = vadd.f32 %v333, %v808
      %v810 = vpop.f32.mrb[0].mxu0
      %811 = vmatprep.mubr.bf16.mxu0 0
      %812 = vmatmul.mubr.bf16.gmra.mrb[0].mxu0 %v575
      %v813 = vpop.f32.mrb[0].mxu0
      %v814 = vadd.f32 %v333, %v813
      %v815 = vpop.f32.mrb[0].mxu0
      %v816 = vpop.f32.mrb[0].mxu0
      %v817 = vadd.f32 %v333, %v816
      %v818 = vpop.f32.mrb[0].mxu0
      %819 = vmatprep.mubr.bf16.mxu0 0
      %820 = vmatmul.mubr.bf16.gmra.mrb[0].mxu0 %v578
      %v821 = vpop.f32.mrb[0].mxu0
      %v822 = vadd.f32 %v333, %v821
      %v823 = vpop.f32.mrb[0].mxu0
      %v824 = vpop.f32.mrb[0].mxu0
      %v825 = vadd.f32 %v333, %v824
      %v826 = vpop.f32.mrb[0].mxu0
      %827 = vmatprep.mubr.bf16.mxu0 0
      %828 = vmatmul.mubr.bf16.gmra.mrb[0].mxu0 %v581
      %v829 = vpop.f32.mrb[0].mxu0
      %v830 = vadd.f32 %v333, %v829
      %v831 = vpop.f32.mrb[0].mxu0
      %v832 = vpop.f32.mrb[0].mxu0
      %v833 = vadd.f32 %v333, %v832
      %v834 = vpop.f32.mrb[0].mxu0
      %835 = vmatprep.mubr.bf16.mxu0 0
      %836 = vmatmul.mubr.bf16.gmra.mrb[0].mxu0 %v584
      %v837 = vpop.f32.mrb[0].mxu0
      %v838 = vadd.f32 %v333, %v837
      %v839 = vpop.f32.mrb[0].mxu0
      %v840 = vpop.f32.mrb[0].mxu0
      %v841 = vadd.f32 %v333, %v840
      %v842 = vpop.f32.mrb[0].mxu0
      %843 = vmatprep.mubr.bf16.mxu0 0
      %844 = vmatmul.mubr.bf16.gmra.mrb[0].mxu0 %v587
      %v845 = vpop.f32.mrb[0].mxu0
      %v846 = vadd.f32 %v333, %v845
      %v847 = vpop.f32.mrb[0].mxu0
      %v848 = vpop.f32.mrb[0].mxu0
      %v849 = vadd.f32 %v333, %v848
      %v850 = vpop.f32.mrb[0].mxu0
      %851 = vmatprep.mubr.bf16.mxu0 0
      %852 = vmatmul.mubr.bf16.gmra.mrb[0].mxu0 %v590
      %v853 = vpop.f32.mrb[0].mxu0
      %v854 = vadd.f32 %v333, %v853
      %v855 = vpop.f32.mrb[0].mxu0
      %v856 = vpop.f32.mrb[0].mxu0
      %v857 = vadd.f32 %v333, %v856
      %v858 = vpop.f32.mrb[0].mxu0
      %859 = vmatprep.mubr.bf16.mxu0 0
      %860 = vmatmul.mubr.bf16.gmra.mrb[0].mxu0 %v593
      %v861 = vpop.f32.mrb[0].mxu0
      %v862 = vadd.f32 %v333, %v861
      %v863 = vpop.f32.mrb[0].mxu0
      %v864 = vpop.f32.mrb[0].mxu0
      %v865 = vadd.f32 %v333, %v864
      %v866 = vpop.f32.mrb[0].mxu0
      %867 = vmatprep.mubr.bf16.mxu0 0
      %868 = vmatmul.mubr.bf16.gmra.mrb[0].mxu0 %v596
      %v869 = vpop.f32.mrb[0].mxu0
      %v870 = vadd.f32 %v333, %v869
      %v871 = vpop.f32.mrb[0].mxu0
      %v872 = vpop.f32.mrb[0].mxu0
      %v873 = vadd.f32 %v333, %v872
      %v874 = vpop.f32.mrb[0].mxu0
      %875 = vmatprep.mubr.bf16.mxu0 0
      %876 = vmatmul.mubr.bf16.gmra.mrb[0].mxu0 %v599
      %v877 = vpop.f32.mrb[0].mxu0
      %v878 = vadd.f32 %v333, %v877
      %v879 = vpop.f32.mrb[0].mxu0
      %v880 = vpop.f32.mrb[0].mxu0
      %v881 = vadd.f32 %v333, %v880
      %v882 = vpop.f32.mrb[0].mxu0
      %883 = vmatprep.mubr.bf16.mxu0 0
      %884 = vmatmul.mubr.bf16.gmra.mrb[0].mxu0 %v602
      %v885 = vpop.f32.mrb[0].mxu0
      %v886 = vadd.f32 %v333, %v885
      %v887 = vpop.f32.mrb[0].mxu0
      %v888 = vpop.f32.mrb[0].mxu0
      %v889 = vadd.f32 %v333, %v888
      %v890 = vpop.f32.mrb[0].mxu0
      %891 = vmatprep.mubr.bf16.mxu0 0
      %892 = vmatmul.mubr.bf16.gmra.mrb[0].mxu0 %v605
      %v893 = vpop.f32.mrb[0].mxu0
      %v894 = vadd.f32 %v333, %v893
      %v895 = vpop.f32.mrb[0].mxu0
      %v896 = vpop.f32.mrb[0].mxu0
      %v897 = vadd.f32 %v333, %v896
      %v898 = vpop.f32.mrb[0].mxu0
      %899 = vdwg.mxu0
      %v900 = vadd.f32 %v646, %v649
      %v901 = vadd.f32 %v900, %v654
      %v902 = vadd.f32 %v901, %v657
      %v903 = vadd.f32 %v902, %v662
      %v904 = vadd.f32 %v903, %v665
      %v905 = vadd.f32 %v904, %v670
      %v906 = vadd.f32 %v905, %v673
      %v907 = vadd.f32 %v906, %v678
      %v908 = vadd.f32 %v907, %v681
      %v909 = vadd.f32 %v908, %v686
      %v910 = vadd.f32 %v909, %v689
      %v911 = vadd.f32 %v910, %v694
      %v912 = vadd.f32 %v911, %v697
      %v913 = vadd.f32 %v912, %v702
      %v914 = vadd.f32 %v913, %v705
      %v915 = vadd.f32 %v914, %v710
      %v916 = vadd.f32 %v915, %v713
      %v917 = vadd.f32 %v916, %v718
      %v918 = vadd.f32 %v917, %v721
      %v919 = vadd.f32 %v918, %v726
      %v920 = vadd.f32 %v919, %v729
      %v921 = vadd.f32 %v920, %v734
      %v922 = vadd.f32 %v921, %v737
      %v923 = vadd.f32 %v922, %v742
      %v924 = vadd.f32 %v923, %v745
      %v925 = vadd.f32 %v924, %v750
      %v926 = vadd.f32 %v925, %v753
      %v927 = vadd.f32 %v926, %v758
      %v928 = vadd.f32 %v927, %v761
      %v929 = vadd.f32 %v928, %v766
      %v930 = vadd.f32 %v929, %v769
      %v931 = vadd.f32 %v930, %v774
      %v932 = vadd.f32 %v931, %v777
      %v933 = vadd.f32 %v932, %v782
      %v934 = vadd.f32 %v933, %v785
      %v935 = vadd.f32 %v934, %v790
      %v936 = vadd.f32 %v935, %v793
      %v937 = vadd.f32 %v936, %v798
      %v938 = vadd.f32 %v937, %v801
      %v939 = vadd.f32 %v938, %v806
      %v940 = vadd.f32 %v939, %v809
      %v941 = vadd.f32 %v940, %v814
      %v942 = vadd.f32 %v941, %v817
      %v943 = vadd.f32 %v942, %v822
      %v944 = vadd.f32 %v943, %v825
      %v945 = vadd.f32 %v944, %v830
      %v946 = vadd.f32 %v945, %v833
      %v947 = vadd.f32 %v946, %v838
      %v948 = vadd.f32 %v947, %v841
      %v949 = vadd.f32 %v948, %v846
      %v950 = vadd.f32 %v949, %v849
      %v951 = vadd.f32 %v950, %v854
      %v952 = vadd.f32 %v951, %v857
      %v953 = vadd.f32 %v952, %v862
      %v954 = vadd.f32 %v953, %v865
      %v955 = vadd.f32 %v954, %v870
      %v956 = vadd.f32 %v955, %v873
      %v957 = vadd.f32 %v956, %v878
      %v958 = vadd.f32 %v957, %v881
      %v959 = vadd.f32 %v958, %v886
      %v960 = vadd.f32 %v959, %v889
      %v961 = vadd.f32 %v960, %v894
      %v962 = vadd.f32 %v961, %v897
      %v963 = vrot.slane %v962, 4
      %v964 = vadd.f32 %v962, %v963
      %v965 = vrot.slane %v964, 2
      %v966 = vadd.f32 %v964, %v965
      %v967 = vrot.slane %v966, 1
      %v968 = vadd.f32 %v966, %v967
      %969 = vst [vmem:[%s257] sm:$0x1] %v968
      %v970 = vmul.f32 %v646, %v646
      %v971 = vmul.f32 %v649, %v649
      %v972 = vmul.f32 %v654, %v654
      %v973 = vmul.f32 %v657, %v657
      %v974 = vmul.f32 %v662, %v662
      %v975 = vmul.f32 %v665, %v665
      %v976 = vmul.f32 %v670, %v670
      %v977 = vmul.f32 %v673, %v673
      %v978 = vmul.f32 %v678, %v678
      %v979 = vmul.f32 %v681, %v681
      %v980 = vmul.f32 %v686, %v686
      %v981 = vmul.f32 %v689, %v689
      %v982 = vmul.f32 %v694, %v694
      %v983 = vmul.f32 %v697, %v697
      %v984 = vmul.f32 %v702, %v702
      %v985 = vmul.f32 %v705, %v705
      %v986 = vmul.f32 %v710, %v710
      %v987 = vmul.f32 %v713, %v713
      %v988 = vmul.f32 %v718, %v718
      %v989 = vmul.f32 %v721, %v721
      %v990 = vmul.f32 %v726, %v726
      %v991 = vmul.f32 %v729, %v729
      %v992 = vmul.f32 %v734, %v734
      %v993 = vmul.f32 %v737, %v737
      %v994 = vmul.f32 %v742, %v742
      %v995 = vmul.f32 %v745, %v745
      %v996 = vmul.f32 %v750, %v750
      %v997 = vmul.f32 %v753, %v753
      %v998 = vmul.f32 %v758, %v758
      %v999 = vmul.f32 %v761, %v761
      %v1000 = vmul.f32 %v766, %v766
      %v1001 = vmul.f32 %v769, %v769
      %v1002 = vmul.f32 %v774, %v774
      %v1003 = vmul.f32 %v777, %v777
      %v1004 = vmul.f32 %v782, %v782
      %v1005 = vmul.f32 %v785, %v785
      %v1006 = vmul.f32 %v790, %v790
      %v1007 = vmul.f32 %v793, %v793
      %v1008 = vmul.f32 %v798, %v798
      %v1009 = vmul.f32 %v801, %v801
      %v1010 = vmul.f32 %v806, %v806
      %v1011 = vmul.f32 %v809, %v809
      %v1012 = vmul.f32 %v814, %v814
      %v1013 = vmul.f32 %v817, %v817
      %v1014 = vmul.f32 %v822, %v822
      %v1015 = vmul.f32 %v825, %v825
      %v1016 = vmul.f32 %v830, %v830
      %v1017 = vmul.f32 %v833, %v833
      %v1018 = vmul.f32 %v838, %v838
      %v1019 = vmul.f32 %v841, %v841
      %v1020 = vmul.f32 %v846, %v846
      %v1021 = vmul.f32 %v849, %v849
      %v1022 = vmul.f32 %v854, %v854
      %v1023 = vmul.f32 %v857, %v857
      %v1024 = vmul.f32 %v862, %v862
      %v1025 = vmul.f32 %v865, %v865
      %v1026 = vmul.f32 %v870, %v870
      %v1027 = vmul.f32 %v873, %v873
      %v1028 = vmul.f32 %v878, %v878
      %v1029 = vmul.f32 %v881, %v881
      %v1030 = vmul.f32 %v886, %v886
      %v1031 = vmul.f32 %v889, %v889
      %v1032 = vmul.f32 %v894, %v894
      %v1033 = vmul.f32 %v897, %v897
      %v1034 = vadd.f32 %v970, %v971
      %v1035 = vadd.f32 %v1034, %v972
      %v1036 = vadd.f32 %v1035, %v973
      %v1037 = vadd.f32 %v1036, %v974
      %v1038 = vadd.f32 %v1037, %v975
      %v1039 = vadd.f32 %v1038, %v976
      %v1040 = vadd.f32 %v1039, %v977
      %v1041 = vadd.f32 %v1040, %v978
      %v1042 = vadd.f32 %v1041, %v979
      %v1043 = vadd.f32 %v1042, %v980
      %v1044 = vadd.f32 %v1043, %v981
      %v1045 = vadd.f32 %v1044, %v982
      %v1046 = vadd.f32 %v1045, %v983
      %v1047 = vadd.f32 %v1046, %v984
      %v1048 = vadd.f32 %v1047, %v985
      %v1049 = vadd.f32 %v1048, %v986
      %v1050 = vadd.f32 %v1049, %v987
      %v1051 = vadd.f32 %v1050, %v988
      %v1052 = vadd.f32 %v1051, %v989
      %v1053 = vadd.f32 %v1052, %v990
      %v1054 = vadd.f32 %v1053, %v991
      %v1055 = vadd.f32 %v1054, %v992
      %v1056 = vadd.f32 %v1055, %v993
      %v1057 = vadd.f32 %v1056, %v994
      %v1058 = vadd.f32 %v1057, %v995
      %v1059 = vadd.f32 %v1058, %v996
      %v1060 = vadd.f32 %v1059, %v997
      %v1061 = vadd.f32 %v1060, %v998
      %v1062 = vadd.f32 %v1061, %v999
      %v1063 = vadd.f32 %v1062, %v1000
      %v1064 = vadd.f32 %v1063, %v1001
      %v1065 = vadd.f32 %v1064, %v1002
      %v1066 = vadd.f32 %v1065, %v1003
      %v1067 = vadd.f32 %v1066, %v1004
      %v1068 = vadd.f32 %v1067, %v1005
      %v1069 = vadd.f32 %v1068, %v1006
      %v1070 = vadd.f32 %v1069, %v1007
      %v1071 = vadd.f32 %v1070, %v1008
      %v1072 = vadd.f32 %v1071, %v1009
      %v1073 = vadd.f32 %v1072, %v1010
      %v1074 = vadd.f32 %v1073, %v1011
      %v1075 = vadd.f32 %v1074, %v1012
      %v1076 = vadd.f32 %v1075, %v1013
      %v1077 = vadd.f32 %v1076, %v1014
      %v1078 = vadd.f32 %v1077, %v1015
      %v1079 = vadd.f32 %v1078, %v1016
      %v1080 = vadd.f32 %v1079, %v1017
      %v1081 = vadd.f32 %v1080, %v1018
      %v1082 = vadd.f32 %v1081, %v1019
      %v1083 = vadd.f32 %v1082, %v1020
      %v1084 = vadd.f32 %v1083, %v1021
      %v1085 = vadd.f32 %v1084, %v1022
      %v1086 = vadd.f32 %v1085, %v1023
      %v1087 = vadd.f32 %v1086, %v1024
      %v1088 = vadd.f32 %v1087, %v1025
      %v1089 = vadd.f32 %v1088, %v1026
      %v1090 = vadd.f32 %v1089, %v1027
      %v1091 = vadd.f32 %v1090, %v1028
      %v1092 = vadd.f32 %v1091, %v1029
      %v1093 = vadd.f32 %v1092, %v1030
      %v1094 = vadd.f32 %v1093, %v1031
      %v1095 = vadd.f32 %v1094, %v1032
      %v1096 = vadd.f32 %v1095, %v1033
      %v1097 = vrot.slane %v1096, 4
      %v1098 = vadd.f32 %v1096, %v1097
      %v1099 = vrot.slane %v1098, 2
      %v1100 = vadd.f32 %v1098, %v1099
      %v1101 = vrot.slane %v1100, 1
      %v1102 = vadd.f32 %v1100, %v1101
      %1103 = vst [vmem:[%s257 + $0x1] sm:$0x1] %v1102
      %v1104 = vpack.c.bf16 %v649, %v646
      %v1105 = vpack.c.bf16 %v657, %v654
      %v1106 = vpack.c.bf16 %v665, %v662
      %v1107 = vpack.c.bf16 %v673, %v670
      %v1108 = vpack.c.bf16 %v681, %v678
      %v1109 = vpack.c.bf16 %v689, %v686
      %v1110 = vpack.c.bf16 %v697, %v694
      %v1111 = vpack.c.bf16 %v705, %v702
      %v1112 = vpack.c.bf16 %v713, %v710
      %v1113 = vpack.c.bf16 %v721, %v718
      %v1114 = vpack.c.bf16 %v729, %v726
      %v1115 = vpack.c.bf16 %v737, %v734
      %v1116 = vpack.c.bf16 %v745, %v742
      %v1117 = vpack.c.bf16 %v753, %v750
      %v1118 = vpack.c.bf16 %v761, %v758
      %v1119 = vpack.c.bf16 %v769, %v766
      %v1120 = vpack.c.bf16 %v777, %v774
      %v1121 = vpack.c.bf16 %v785, %v782
      %v1122 = vpack.c.bf16 %v793, %v790
      %v1123 = vpack.c.bf16 %v801, %v798
      %v1124 = vpack.c.bf16 %v809, %v806
      %v1125 = vpack.c.bf16 %v817, %v814
      %v1126 = vpack.c.bf16 %v825, %v822
      %v1127 = vpack.c.bf16 %v833, %v830
      %v1128 = vpack.c.bf16 %v841, %v838
      %v1129 = vpack.c.bf16 %v849, %v846
      %v1130 = vpack.c.bf16 %v857, %v854
      %v1131 = vpack.c.bf16 %v865, %v862
      %v1132 = vpack.c.bf16 %v873, %v870
      %v1133 = vpack.c.bf16 %v881, %v878
      %v1134 = vpack.c.bf16 %v889, %v886
      %v1135 = vpack.c.bf16 %v897, %v894
      %v1168 = vunpack.c.l.b16 %v1104
      %v1169 = vunpack.c.h.b16 %v1104
      %v1170 = vunpack.c.l.b16 %v1105
      %v1171 = vunpack.c.h.b16 %v1105
      %v1172 = vunpack.c.l.b16 %v1106
      %v1173 = vunpack.c.h.b16 %v1106
      %v1174 = vunpack.c.l.b16 %v1107
      %v1175 = vunpack.c.h.b16 %v1107
      %v1176 = vunpack.c.l.b16 %v1108
      %v1177 = vunpack.c.h.b16 %v1108
      %v1178 = vunpack.c.l.b16 %v1109
      %v1179 = vunpack.c.h.b16 %v1109
      %v1180 = vunpack.c.l.b16 %v1110
      %v1181 = vunpack.c.h.b16 %v1110
      %v1182 = vunpack.c.l.b16 %v1111
      %v1183 = vunpack.c.h.b16 %v1111
      %v1184 = vunpack.c.l.b16 %v1112
      %v1185 = vunpack.c.h.b16 %v1112
      %v1186 = vunpack.c.l.b16 %v1113
      %v1187 = vunpack.c.h.b16 %v1113
      %v1188 = vunpack.c.l.b16 %v1114
      %v1189 = vunpack.c.h.b16 %v1114
      %v1190 = vunpack.c.l.b16 %v1115
      %v1191 = vunpack.c.h.b16 %v1115
      %v1192 = vunpack.c.l.b16 %v1116
      %v1193 = vunpack.c.h.b16 %v1116
      %v1194 = vunpack.c.l.b16 %v1117
      %v1195 = vunpack.c.h.b16 %v1117
      %v1196 = vunpack.c.l.b16 %v1118
      %v1197 = vunpack.c.h.b16 %v1118
      %v1198 = vunpack.c.l.b16 %v1119
      %v1199 = vunpack.c.h.b16 %v1119
      %v1200 = vunpack.c.l.b16 %v1120
      %v1201 = vunpack.c.h.b16 %v1120
      %v1202 = vunpack.c.l.b16 %v1121
      %v1203 = vunpack.c.h.b16 %v1121
      %v1204 = vunpack.c.l.b16 %v1122
      %v1205 = vunpack.c.h.b16 %v1122
      %v1206 = vunpack.c.l.b16 %v1123
      %v1207 = vunpack.c.h.b16 %v1123
      %v1208 = vunpack.c.l.b16 %v1124
      %v1209 = vunpack.c.h.b16 %v1124
      %v1210 = vunpack.c.l.b16 %v1125
      %v1211 = vunpack.c.h.b16 %v1125
      %v1212 = vunpack.c.l.b16 %v1126
      %v1213 = vunpack.c.h.b16 %v1126
      %v1214 = vunpack.c.l.b16 %v1127
      %v1215 = vunpack.c.h.b16 %v1127
      %v1216 = vunpack.c.l.b16 %v1128
      %v1217 = vunpack.c.h.b16 %v1128
      %v1218 = vunpack.c.l.b16 %v1129
      %v1219 = vunpack.c.h.b16 %v1129
      %v1220 = vunpack.c.l.b16 %v1130
      %v1221 = vunpack.c.h.b16 %v1130
      %v1222 = vunpack.c.l.b16 %v1131
      %v1223 = vunpack.c.h.b16 %v1131
      %v1224 = vunpack.c.l.b16 %v1132
      %v1225 = vunpack.c.h.b16 %v1132
      %v1226 = vunpack.c.l.b16 %v1133
      %v1227 = vunpack.c.h.b16 %v1133
      %v1228 = vunpack.c.l.b16 %v1134
      %v1229 = vunpack.c.h.b16 %v1134
      %v1230 = vunpack.c.l.b16 %v1135
      %v1231 = vunpack.c.h.b16 %v1135
      %v1232 = vpack.c.b16 %v1168, %v1168
      %v1233 = vpack.c.b16 %v1169, %v1169
      %v1234 = vpack.c.b16 %v1170, %v1170
      %v1235 = vpack.c.b16 %v1171, %v1171
      %v1236 = vpack.c.b16 %v1172, %v1172
      %v1237 = vpack.c.b16 %v1173, %v1173
      %v1238 = vpack.c.b16 %v1174, %v1174
      %v1239 = vpack.c.b16 %v1175, %v1175
      %v1240 = vpack.c.b16 %v1176, %v1176
      %v1241 = vpack.c.b16 %v1177, %v1177
      %v1242 = vpack.c.b16 %v1178, %v1178
      %v1243 = vpack.c.b16 %v1179, %v1179
      %v1244 = vpack.c.b16 %v1180, %v1180
      %v1245 = vpack.c.b16 %v1181, %v1181
      %v1246 = vpack.c.b16 %v1182, %v1182
      %v1247 = vpack.c.b16 %v1183, %v1183
      %v1248 = vpack.c.b16 %v1184, %v1184
      %v1249 = vpack.c.b16 %v1185, %v1185
      %v1250 = vpack.c.b16 %v1186, %v1186
      %v1251 = vpack.c.b16 %v1187, %v1187
      %v1252 = vpack.c.b16 %v1188, %v1188
      %v1253 = vpack.c.b16 %v1189, %v1189
      %v1254 = vpack.c.b16 %v1190, %v1190
      %v1255 = vpack.c.b16 %v1191, %v1191
      %v1256 = vpack.c.b16 %v1192, %v1192
      %v1257 = vpack.c.b16 %v1193, %v1193
      %v1258 = vpack.c.b16 %v1194, %v1194
      %v1259 = vpack.c.b16 %v1195, %v1195
      %v1260 = vpack.c.b16 %v1196, %v1196
      %v1261 = vpack.c.b16 %v1197, %v1197
      %v1262 = vpack.c.b16 %v1198, %v1198
      %v1263 = vpack.c.b16 %v1199, %v1199
      %v1264 = vpack.c.b16 %v1200, %v1200
      %v1265 = vpack.c.b16 %v1201, %v1201
      %v1266 = vpack.c.b16 %v1202, %v1202
      %v1267 = vpack.c.b16 %v1203, %v1203
      %v1268 = vpack.c.b16 %v1204, %v1204
      %v1269 = vpack.c.b16 %v1205, %v1205
      %v1270 = vpack.c.b16 %v1206, %v1206
      %v1271 = vpack.c.b16 %v1207, %v1207
      %v1272 = vpack.c.b16 %v1208, %v1208
      %v1273 = vpack.c.b16 %v1209, %v1209
      %v1274 = vpack.c.b16 %v1210, %v1210
      %v1275 = vpack.c.b16 %v1211, %v1211
      %v1276 = vpack.c.b16 %v1212, %v1212
      %v1277 = vpack.c.b16 %v1213, %v1213
      %v1278 = vpack.c.b16 %v1214, %v1214
      %v1279 = vpack.c.b16 %v1215, %v1215
      %v1280 = vpack.c.b16 %v1216, %v1216
      %v1281 = vpack.c.b16 %v1217, %v1217
      %v1282 = vpack.c.b16 %v1218, %v1218
      %v1283 = vpack.c.b16 %v1219, %v1219
      %v1284 = vpack.c.b16 %v1220, %v1220
      %v1285 = vpack.c.b16 %v1221, %v1221
      %v1286 = vpack.c.b16 %v1222, %v1222
      %v1287 = vpack.c.b16 %v1223, %v1223
      %v1288 = vpack.c.b16 %v1224, %v1224
      %v1289 = vpack.c.b16 %v1225, %v1225
      %v1290 = vpack.c.b16 %v1226, %v1226
      %v1291 = vpack.c.b16 %v1227, %v1227
      %v1292 = vpack.c.b16 %v1228, %v1228
      %v1293 = vpack.c.b16 %v1229, %v1229
      %v1294 = vpack.c.b16 %v1230, %v1230
      %v1295 = vpack.c.b16 %v1231, %v1231
      %vm1360 = vcmask 60416
      %1361 = vst.msk [vmem:[%s248] sm:$0xf] %vm1360, %v1232
      %1362 = vst.msk [vmem:[%s248 + $0x4] sm:$0xf] %vm1360, %v1233
      %1363 = vst.msk [vmem:[%s248 + $0x8] sm:$0xf] %vm1360, %v1234
      %1364 = vst.msk [vmem:[%s248 + $0xc] sm:$0xf] %vm1360, %v1235
      %1365 = vst.msk [vmem:[%s248 + $0x10] sm:$0xf] %vm1360, %v1236
      %1366 = vst.msk [vmem:[%s248 + $0x14] sm:$0xf] %vm1360, %v1237
      %1367 = vst.msk [vmem:[%s248 + $0x18] sm:$0xf] %vm1360, %v1238
      %1368 = vst.msk [vmem:[%s248 + $0x1c] sm:$0xf] %vm1360, %v1239
      %1369 = vst.msk [vmem:[%s248 + $0x20] sm:$0xf] %vm1360, %v1240
      %1370 = vst.msk [vmem:[%s248 + $0x24] sm:$0xf] %vm1360, %v1241
      %1371 = vst.msk [vmem:[%s248 + $0x28] sm:$0xf] %vm1360, %v1242
      %1372 = vst.msk [vmem:[%s248 + $0x2c] sm:$0xf] %vm1360, %v1243
      %1373 = vst.msk [vmem:[%s248 + $0x30] sm:$0xf] %vm1360, %v1244
      %1374 = vst.msk [vmem:[%s248 + $0x34] sm:$0xf] %vm1360, %v1245
      %1375 = vst.msk [vmem:[%s248 + $0x38] sm:$0xf] %vm1360, %v1246
      %1376 = vst.msk [vmem:[%s248 + $0x3c] sm:$0xf] %vm1360, %v1247
      %1377 = vst.msk [vmem:[%s248 + $0x40] sm:$0xf] %vm1360, %v1248
      %1378 = vst.msk [vmem:[%s248 + $0x44] sm:$0xf] %vm1360, %v1249
      %1379 = vst.msk [vmem:[%s248 + $0x48] sm:$0xf] %vm1360, %v1250
      %1380 = vst.msk [vmem:[%s248 + $0x4c] sm:$0xf] %vm1360, %v1251
      %1381 = vst.msk [vmem:[%s248 + $0x50] sm:$0xf] %vm1360, %v1252
      %1382 = vst.msk [vmem:[%s248 + $0x54] sm:$0xf] %vm1360, %v1253
      %1383 = vst.msk [vmem:[%s248 + $0x58] sm:$0xf] %vm1360, %v1254
      %1384 = vst.msk [vmem:[%s248 + $0x5c] sm:$0xf] %vm1360, %v1255
      %1385 = vst.msk [vmem:[%s248 + $0x60] sm:$0xf] %vm1360, %v1256
      %1386 = vst.msk [vmem:[%s248 + $0x64] sm:$0xf] %vm1360, %v1257
      %1387 = vst.msk [vmem:[%s248 + $0x68] sm:$0xf] %vm1360, %v1258
      %1388 = vst.msk [vmem:[%s248 + $0x6c] sm:$0xf] %vm1360, %v1259
      %1389 = vst.msk [vmem:[%s248 + $0x70] sm:$0xf] %vm1360, %v1260
      %1390 = vst.msk [vmem:[%s248 + $0x74] sm:$0xf] %vm1360, %v1261
      %1391 = vst.msk [vmem:[%s248 + $0x78] sm:$0xf] %vm1360, %v1262
      %1392 = vst.msk [vmem:[%s248 + $0x7c] sm:$0xf] %vm1360, %v1263
      %1393 = vst.msk [vmem:[%s248 + $0x80] sm:$0xf] %vm1360, %v1264
      %1394 = vst.msk [vmem:[%s248 + $0x84] sm:$0xf] %vm1360, %v1265
      %1395 = vst.msk [vmem:[%s248 + $0x88] sm:$0xf] %vm1360, %v1266
      %1396 = vst.msk [vmem:[%s248 + $0x8c] sm:$0xf] %vm1360, %v1267
      %1397 = vst.msk [vmem:[%s248 + $0x90] sm:$0xf] %vm1360, %v1268
      %1398 = vst.msk [vmem:[%s248 + $0x94] sm:$0xf] %vm1360, %v1269
      %1399 = vst.msk [vmem:[%s248 + $0x98] sm:$0xf] %vm1360, %v1270
      %1400 = vst.msk [vmem:[%s248 + $0x9c] sm:$0xf] %vm1360, %v1271
      %1401 = vst.msk [vmem:[%s248 + $0xa0] sm:$0xf] %vm1360, %v1272
      %1402 = vst.msk [vmem:[%s248 + $0xa4] sm:$0xf] %vm1360, %v1273
      %1403 = vst.msk [vmem:[%s248 + $0xa8] sm:$0xf] %vm1360, %v1274
      %1404 = vst.msk [vmem:[%s248 + $0xac] sm:$0xf] %vm1360, %v1275
      %1405 = vst.msk [vmem:[%s248 + $0xb0] sm:$0xf] %vm1360, %v1276
      %1406 = vst.msk [vmem:[%s248 + $0xb4] sm:$0xf] %vm1360, %v1277
      %1407 = vst.msk [vmem:[%s248 + $0xb8] sm:$0xf] %vm1360, %v1278
      %1408 = vst.msk [vmem:[%s248 + $0xbc] sm:$0xf] %vm1360, %v1279
      %1409 = vst.msk [vmem:[%s248 + $0xc0] sm:$0xf] %vm1360, %v1280
      %1410 = vst.msk [vmem:[%s248 + $0xc4] sm:$0xf] %vm1360, %v1281
      %1411 = vst.msk [vmem:[%s248 + $0xc8] sm:$0xf] %vm1360, %v1282
      %1412 = vst.msk [vmem:[%s248 + $0xcc] sm:$0xf] %vm1360, %v1283
      %1413 = vst.msk [vmem:[%s248 + $0xd0] sm:$0xf] %vm1360, %v1284
      %1414 = vst.msk [vmem:[%s248 + $0xd4] sm:$0xf] %vm1360, %v1285
      %1415 = vst.msk [vmem:[%s248 + $0xd8] sm:$0xf] %vm1360, %v1286
      %1416 = vst.msk [vmem:[%s248 + $0xdc] sm:$0xf] %vm1360, %v1287
      %1417 = vst.msk [vmem:[%s248 + $0xe0] sm:$0xf] %vm1360, %v1288
      %1418 = vst.msk [vmem:[%s248 + $0xe4] sm:$0xf] %vm1360, %v1289
      %1419 = vst.msk [vmem:[%s248 + $0xe8] sm:$0xf] %vm1360, %v1290
      %1420 = vst.msk [vmem:[%s248 + $0xec] sm:$0xf] %vm1360, %v1291
      %1421 = vst.msk [vmem:[%s248 + $0xf0] sm:$0xf] %vm1360, %v1292
      %1422 = vst.msk [vmem:[%s248 + $0xf4] sm:$0xf] %vm1360, %v1293
      %1423 = vst.msk [vmem:[%s248 + $0xf8] sm:$0xf] %vm1360, %v1294
      %1424 = vst.msk [vmem:[%s248 + $0xfc] sm:$0xf] %vm1360, %v1295
      %s1425 = smul.u32 64, %s21
      %p1426 = scmp.lt.s32.totalorder %s20, 1
      %s1427 = scalar_select %p1426, %s20, 1
      %p1428 = scmp.lt.s32.totalorder %s1425, 127
      %s1429 = scalar_select %p1428, %s1425, 127
      %s1430 = smul.addr %s1427, 128
      %s1431 = sadd.s32 %s1429, %s1430
      %s1432 = smul.addr %s1431, 4
      %s1433 = scalar_lea.vmem %s3, %s1432
      %p1434 = scmp.lt.s32.totalorder %s20, 1
      %s1435 = scalar_select %p1434, %s20, 1
      %p1436 = scmp.lt.s32.totalorder %s21, 1
      %s1437 = scalar_select %p1436, %s21, 1
      %s1438 = smul.addr %s1435, 2
      %s1439 = sadd.s32 %s1437, %s1438
      %s1440 = smul.addr %s1439, 2
      %s1441 = scalar_lea.vmem %s4, %s1440
      // Predicated region
      $region33: #{upsample_forward.2} parent=31 // pred_check
        %p1442 = pneg %p118
      $region34: #{upsample_forward.2} parent=31 // pred_check_branch
        %1444 = sbr.rel (%p1442) target = $region36
      $region35: #{upsample_forward.2} parent=31 // pred_region
        %s1445 = smul.u32 64, %s21
      $region36: #{upsample_forward.2} parent=31 // pred_fallthru
        _
      // Predicated region
      $region37: #{upsample_forward.2} parent=31 // pred_check
        %p1446 = pneg %p146
      $region38: #{upsample_forward.2} parent=31 // pred_check_branch
        %1448 = sbr.rel (%p1446) target = $region40
      $region39: #{upsample_forward.2} parent=31 // pred_region
        _
      $region40: #{upsample_forward.2} parent=31 // pred_fallthru
        _
    $region32: #{upsample_forward.2} parent=5 // pred_fallthru
      _
    %p1449 = scmp.le.s32.totalorder 2, %s11
    // Predicated region
    $region41: #{upsample_forward.2} parent=5 // pred_check
      %p1450 = pneg %p1449
    $region42: #{upsample_forward.2} parent=5 // pred_check_branch
      %1452 = sbr.rel (%p1450) target = $region44
    $region43: #{upsample_forward.2} parent=5 // pred_region
      %s1453 = ssub.s32 %s11, 2
      // Predicated region
      $region45: #{upsample_forward.2} parent=43 // pred_check
        %p1454 = pneg %p124
      $region46: #{upsample_forward.2} parent=43 // pred_check_branch
        %1456 = sbr.rel (%p1454) target = $region48
      $region47: #{upsample_forward.2} parent=43 // pred_region
        %s1457 = smul.u32 64, %s23
        %p1458 = scmp.lt.s32.totalorder %s22, 1
        %s1459 = scalar_select %p1458, %s22, 1
        %p1460 = scmp.lt.s32.totalorder %s1457, 127
        %s1461 = scalar_select %p1460, %s1457, 127
        %s1462 = smul.addr %s1459, 128
        %s1463 = sadd.s32 %s1461, %s1462
        %s1464 = smul.addr %s1463, 4
        %s1465 = scalar_lea.vmem %s3, %s1464
      $region48: #{upsample_forward.2} parent=43 // pred_fallthru
        _
      // Predicated region
      $region49: #{upsample_forward.2} parent=43 // pred_check
        %p1466 = pneg %p152
      $region50: #{upsample_forward.2} parent=43 // pred_check_branch
        %1468 = sbr.rel (%p1466) target = $region52
      $region51: #{upsample_forward.2} parent=43 // pred_region
        %p1469 = scmp.lt.s32.totalorder %s22, 1
        %s1470 = scalar_select %p1469, %s22, 1
        %p1471 = scmp.lt.s32.totalorder %s23, 1
        %s1472 = scalar_select %p1471, %s23, 1
        %s1473 = smul.addr %s1470, 2
        %s1474 = sadd.s32 %s1472, %s1473
        %s1475 = smul.addr %s1474, 2
        %s1476 = scalar_lea.vmem %s4, %s1475
      $region52: #{upsample_forward.2} parent=43 // pred_fallthru
        _
    $region44: #{upsample_forward.2} parent=5 // pred_fallthru
      _
  $region6: #{upsample_forward.2} parent=0 // loop_footer
    %s15 = sadd.s32 1, %s11
  $region7: #{upsample_forward.2} parent=0 // loop_footer_branch
    %10 = sbr.rel target = $region3
  $region8: #{upsample_forward.2} parent=0 // loop_exit
    _

</llo_original>
